<compile_context>
chip_gen: v7x
topology: tpu7x:2x2x1
jax: 0.10.0
libtpu: 0.0.40
codegen_flags: <defaults>
</compile_context>

<pallas_src>
import jax
import jax.numpy as jnp
from jax import lax
from jax.experimental import pallas as pl
from jax.experimental.pallas import tpu as pltpu


def _group_kernel(xyz_ref, center_ref, neigh_ref):
    # xyz_ref:    (1, N, 3)  float32   input point cloud (one batch element)
    # center_ref: (1, 3, G)  float32   FPS centers, coordinate-major (lanes = G)
    # neigh_ref:  (1, K, 3, G) float32 recentered neighborhoods, coordinate-major
    xyz_n3 = xyz_ref[0].astype(jnp.float32)            # (N, 3)  (gather-matmul RHS)
    xyz_3n = xyz_n3.T                                  # (3, N)  lane-dense, one transpose
    N = xyz_n3.shape[0]
    G = center_ref.shape[2]
    K = neigh_ref.shape[1]

    # Packed selection keys: high bits = f32 distance bit pattern (order-preserving for
    # non-negative floats), low bits = lane index.  One min/max reduce yields both the
    # winning distance bucket and a unique winner column (keys are unique per row).
    idx_bits = max(1, (N - 1).bit_length())
    low_mask = jnp.int32((1 << idx_bits) - 1)
    hi_mask = jnp.int32(-(1 << idx_bits))              # == ~low_mask

    col_1n = lax.broadcasted_iota(jnp.int32, (1, N), 1)   # (1, N) lane index
    col_gn = lax.broadcasted_iota(jnp.int32, (G, N), 1)   # (G, N) lane index
    g_row = lax.broadcasted_iota(jnp.int32, (G, 1), 0)    # (G, 1)

    coord_rows = [xyz_3n[c:c + 1, :] for c in range(3)]   # 3 x (1, N), loop invariant

    # ---------------- farthest point sampling ----------------
    # TODO(synk): torch's misc.fps may start from a random point; we fix start index 0.
    def fps_body(i, carry):
        onehot, min_d, centers = carry                 # (1,N) f32, (1,N) f32, (G,3) f32
        # Gather the current farthest point's coordinates on the (otherwise idle) MXU.
        pt = jnp.dot(onehot, xyz_n3, preferred_element_type=jnp.float32)   # (1, 3)
        centers = jnp.where(g_row == i, pt, centers)   # O(G*3) per iter -> negligible
        # Squared distance to the new center: 3 broadcast FMAs over a lane-dense (1, N).
        d2 = jnp.zeros((1, N), jnp.float32)
        for c in range(3):
            diff = coord_rows[c] - pt[:, c:c + 1]
            d2 = d2 + diff * diff
        min_d = jnp.minimum(min_d, d2)
        # Packed argmax (first occurrence on ties): single XLU reduce.
        key = (pltpu.bitcast(min_d, jnp.int32) & hi_mask) | (low_mask - col_1n)
        onehot = (key == jnp.max(key)).astype(jnp.float32)   # exactly one-hot
        return onehot, min_d, centers

    init = (
        (col_1n == 0).astype(jnp.float32),             # start from point 0
        jnp.full((1, N), jnp.inf, dtype=jnp.float32),  # +inf init (was 1e10)
        jnp.zeros((G, 3), jnp.float32),
    )
    _, _, centers = lax.fori_loop(0, G, fps_body, init)     # centers: (G, 3)

    center_ref[0] = centers.T.astype(center_ref.dtype)      # (3, G) lane-dense store

    # ---------------- KNN (k = K) + gather + recenter ----------------
    # Direct squared distances, lane-dense (G sublanes, N lanes); no cancellation.
    d = jnp.zeros((G, N), jnp.float32)
    for c in range(3):
        diff = centers[:, c:c + 1] - coord_rows[c]           # (G,1) - (1,N) -> (G,N)
        d = d + diff * diff
    key = (pltpu.bitcast(d, jnp.int32) & hi_mask) | col_gn   # (G, N) packed argmin keys
    int_max = jnp.int32(jnp.iinfo(jnp.int32).max)

    # K is small and static: unroll.  Each step: 1 XLU reduce + 1 MXU one-hot gather.
    for j in range(K):
        kmin = jnp.min(key, axis=1, keepdims=True)           # (G, 1)
        onehot = key == kmin                                  # (G, N), one-hot per row
        gathered = jnp.dot(onehot.astype(jnp.float32), xyz_n3,
                           preferred_element_type=jnp.float32)   # (G, 3) MXU gather
        neigh_ref[0, j, :, :] = (gathered - centers).T.astype(neigh_ref.dtype)  # (3, G)
        if j + 1 < K:
            key = jnp.where(onehot, int_max, key)             # knock out selected column


def group_forward(xyz, num_group, group_size):
    """xyz: (B, N, 3) float32 -> (neighborhood (B, G, M, 3), center (B, G, 3))."""
    B, N, C = xyz.shape
    assert C == 3
    assert group_size <= N, "group_size (k) must not exceed the number of points"
    G, K = num_group, group_size

    center_cg, neigh_kcg = pl.pallas_call(
        _group_kernel,
        out_shape=(
            jax.ShapeDtypeStruct((B, 3, G), xyz.dtype),        # coordinate-major center
            jax.ShapeDtypeStruct((B, K, 3, G), xyz.dtype),     # coordinate-major neigh.
        ),
        grid_spec=pltpu.PrefetchScalarGridSpec(
            num_scalar_prefetch=0,
            grid=(B,),
            in_specs=[pl.BlockSpec((1, N, 3), lambda b: (b, 0, 0))],
            out_specs=(
                pl.BlockSpec((1, 3, G), lambda b: (b, 0, 0)),
                pl.BlockSpec((1, K, 3, G), lambda b: (b, 0, 0, 0)),
            ),
        ),
        compiler_params=pltpu.CompilerParams(dimension_semantics=("parallel",)),
    )(xyz)

    # Cosmetic layout plumbing back to the PyTorch convention (tiny tensors).
    center = jnp.transpose(center_cg, (0, 2, 1))               # (B, G, 3)
    neighborhood = jnp.transpose(neigh_kcg, (0, 3, 1, 2))      # (B, G, K, 3)
    return neighborhood, center


if __name__ == "__main__":
    key = jax.random.PRNGKey(0)
    B, N = 2, 64
    num_group, group_size = 8, 8
    xyz = jax.random.normal(key, (B, N, 3), dtype=jnp.float32)

    fwd = jax.jit(lambda x: group_forward(x, num_group, group_size))
    neighborhood, center = fwd(xyz)
    neighborhood = jax.block_until_ready(neighborhood)
    center = jax.block_until_ready(center)

    assert neighborhood.shape == (B, num_group, group_size, 3)
    assert center.shape == (B, num_group, 3)
    assert bool(jnp.all(jnp.isfinite(neighborhood)))
    assert bool(jnp.all(jnp.isfinite(center)))

    # Semantic sanity checks (insensitive to near-tie ordering):
    # 1) every FPS center is an actual input point
    d_center = jnp.sum((center[:, :, None, :] - xyz[:, None, :, :]) ** 2, axis=-1)
    assert bool(jnp.all(jnp.min(d_center, axis=-1) < 1e-9))
    # 2) each center's nearest neighbor is itself -> first neighborhood offset is ~0
    assert bool(jnp.all(jnp.abs(neighborhood[:, :, 0, :]) < 1e-5))
    # 3) every gathered neighbor (center + offset) is an actual input point
    recon = neighborhood + center[:, :, None, :]                       # (B, G, K, 3)
    d_rec = jnp.sum((recon[:, :, :, None, :] - xyz[:, None, None, :, :]) ** 2, axis=-1)
    assert bool(jnp.all(jnp.min(d_rec, axis=-1) < 1e-9))

    print("KERNEL_OK")
</pallas_src>

<mosaic_0001>
module attributes {stable_mosaic.version = 11 : i64} {
  func.func @_group_kernel(%arg0: i32, %arg1: memref<1x64x3xf32, #tpu.memory_space<vmem>>, %arg2: memref<1x3x8xf32, #tpu.memory_space<vmem>>, %arg3: memref<1x8x3x8xf32, #tpu.memory_space<vmem>>) attributes {dimension_semantics = [#tpu.dimension_semantics<parallel>], iteration_bounds = array<i64: 2>, scalar_prefetch = 0 : i64, scratch_operands = 0 : i64, tpu.core_type = #tpu.core_type<tc>, window_params = [{transform_indices = @transform_0, window_bounds = array<i64: 1, 64, 3>}, {transform_indices = @transform_1, window_bounds = array<i64: 1, 3, 8>}, {transform_indices = @transform_2, window_bounds = array<i64: 1, 8, 3, 8>}]} {
    %c0 = arith.constant 0 : index
    %c0_0 = arith.constant 0 : index
    %c0_1 = arith.constant 0 : index
    %0 = vector.load %arg1[%c0, %c0_0, %c0_1] : memref<1x64x3xf32, #tpu.memory_space<vmem>>, vector<1x64x3xf32>
    %1 = vector.shape_cast %0 : vector<1x64x3xf32> to vector<64x3xf32>
    %2 = tpu.transpose %1, [1, 0] : vector<64x3xf32> -> vector<3x64xf32>
    %3 = tpu.iota {dimensions = array<i32: 1>} : vector<1x64xi32>
    %4 = tpu.iota {dimensions = array<i32: 1>} : vector<8x64xi32>
    %5 = tpu.iota {dimensions = array<i32: 0>} : vector<8x1xi32>
    %6 = vector.extract_strided_slice %2 {offsets = [0, 0], sizes = [1, 64], strides = [1, 1]} : vector<3x64xf32> to vector<1x64xf32>
    %7 = vector.extract_strided_slice %2 {offsets = [1, 0], sizes = [1, 64], strides = [1, 1]} : vector<3x64xf32> to vector<1x64xf32>
    %8 = vector.extract_strided_slice %2 {offsets = [2, 0], sizes = [1, 64], strides = [1, 1]} : vector<3x64xf32> to vector<1x64xf32>
    %c0_i32 = arith.constant 0 : i32
    %9 = vector.broadcast %c0_i32 : i32 to vector<1x64xi32>
    %10 = arith.cmpi eq, %3, %9 : vector<1x64xi32>
    %11 = arith.extui %10 : vector<1x64xi1> to vector<1x64xi32>
    %12 = arith.sitofp %11 : vector<1x64xi32> to vector<1x64xf32>
    %cst = arith.constant 0x7F800000 : f32
    %13 = vector.broadcast %cst : f32 to vector<1x64xf32>
    %cst_2 = arith.constant 0.000000e+00 : f32
    %14 = vector.broadcast %cst_2 : f32 to vector<8x3xf32>
    %c-64_i32 = arith.constant -64 : i32
    %c63_i32 = arith.constant 63 : i32
    %c0_i32_3 = arith.constant 0 : i32
    %c8_i32 = arith.constant 8 : i32
    %15 = arith.addi %c0_i32_3, %c8_i32 : i32
    %c1_i32 = arith.constant 1 : i32
    %16:3 = scf.for %arg4 = %c0_i32_3 to %15 step %c1_i32 iter_args(%arg5 = %12, %arg6 = %13, %arg7 = %14) -> (vector<1x64xf32>, vector<1x64xf32>, vector<8x3xf32>)  : i32 {
      %cst_57 = arith.constant dense<0.000000e+00> : vector<1x3xf32>
      %154 = tpu.matmul %arg5, %1, %cst_57 {dimension_numbers = #tpu.dot_dimension_numbers<[1], [0], [0], [1], [0, 0, 1, 1], [], []>} : vector<1x64xf32>, vector<64x3xf32>, vector<1x3xf32> -> vector<1x3xf32>
      %155 = vector.broadcast %arg4 : i32 to vector<8x1xi32>
      %156 = arith.cmpi eq, %5, %155 : vector<8x1xi32>
      %157 = vector.shape_cast %156 : vector<8x1xi1> to vector<8x1xi1>
      %158 = vector.broadcast %157 : vector<8x1xi1> to vector<8x3xi1>
      %159 = vector.shape_cast %154 : vector<1x3xf32> to vector<1x3xf32>
      %160 = vector.broadcast %159 : vector<1x3xf32> to vector<8x3xf32>
      %161 = arith.select %158, %160, %arg7 : vector<8x3xi1>, vector<8x3xf32>
      %cst_58 = arith.constant 0.000000e+00 : f32
      %162 = vector.broadcast %cst_58 : f32 to vector<1x64xf32>
      %163 = vector.extract_strided_slice %154 {offsets = [0, 0], sizes = [1, 1], strides = [1, 1]} : vector<1x3xf32> to vector<1x1xf32>
      %164 = vector.broadcast %163 : vector<1x1xf32> to vector<1x64xf32>
      %165 = arith.subf %6, %164 : vector<1x64xf32>
      %166 = arith.mulf %165, %165 : vector<1x64xf32>
      %167 = arith.addf %162, %166 : vector<1x64xf32>
      %168 = vector.extract_strided_slice %154 {offsets = [0, 1], sizes = [1, 1], strides = [1, 1]} : vector<1x3xf32> to vector<1x1xf32>
      %169 = vector.broadcast %168 : vector<1x1xf32> to vector<1x64xf32>
      %170 = arith.subf %7, %169 : vector<1x64xf32>
      %171 = arith.mulf %170, %170 : vector<1x64xf32>
      %172 = arith.addf %167, %171 : vector<1x64xf32>
      %173 = vector.extract_strided_slice %154 {offsets = [0, 2], sizes = [1, 1], strides = [1, 1]} : vector<1x3xf32> to vector<1x1xf32>
      %174 = vector.broadcast %173 : vector<1x1xf32> to vector<1x64xf32>
      %175 = arith.subf %8, %174 : vector<1x64xf32>
      %176 = arith.mulf %175, %175 : vector<1x64xf32>
      %177 = arith.addf %172, %176 : vector<1x64xf32>
      %178 = arith.minimumf %arg6, %177 : vector<1x64xf32>
      %179 = tpu.bitcast %178 : vector<1x64xf32> -> vector<1x64xi32>
      %180 = vector.broadcast %c-64_i32 : i32 to vector<1x64xi32>
      %181 = arith.andi %179, %180 : vector<1x64xi32>
      %182 = vector.broadcast %c63_i32 : i32 to vector<1x64xi32>
      %183 = arith.subi %182, %3 : vector<1x64xi32>
      %184 = arith.ori %181, %183 : vector<1x64xi32>
      %185 = vector.shape_cast %184 : vector<1x64xi32> to vector<1x1x64xi32>
      %cst_59 = arith.constant dense<-2147483648> : vector<1xi32>
      %186 = vector.multi_reduction <maxsi>, %185, %cst_59 [1, 2] : vector<1x1x64xi32> to vector<1xi32>
      %187 = vector.shape_cast %186 : vector<1xi32> to vector<1x1x1xi32>
      %188 = vector.extract %187[0, 0, 0] : i32 from vector<1x1x1xi32>
      %189 = vector.broadcast %188 : i32 to vector<1x64xi32>
      %190 = arith.cmpi eq, %184, %189 : vector<1x64xi32>
      %191 = arith.extui %190 : vector<1x64xi1> to vector<1x64xi32>
      %192 = arith.sitofp %191 : vector<1x64xi32> to vector<1x64xf32>
      scf.yield %192, %178, %161 : vector<1x64xf32>, vector<1x64xf32>, vector<8x3xf32>
    }
    %c8_i32_4 = arith.constant 8 : i32
    %17 = tpu.transpose %16#2, [1, 0] : vector<8x3xf32> -> vector<3x8xf32>
    %c0_5 = arith.constant 0 : index
    %c0_6 = arith.constant 0 : index
    %c0_7 = arith.constant 0 : index
    %18 = vector.load %arg2[%c0_5, %c0_6, %c0_7] : memref<1x3x8xf32, #tpu.memory_space<vmem>>, vector<1x3x8xf32>
    %19 = vector.shape_cast %18 : vector<1x3x8xf32> to vector<3x8xf32>
    %20 = vector.shape_cast %17 : vector<3x8xf32> to vector<1x3x8xf32>
    tpu.vector_store %arg2[%c0_5, %c0_6, %c0_7], %20 {strides = array<i32>} : memref<1x3x8xf32, #tpu.memory_space<vmem>>, vector<1x3x8xf32>,
    %cst_8 = arith.constant 0.000000e+00 : f32
    %21 = vector.broadcast %cst_8 : f32 to vector<8x64xf32>
    %22 = vector.extract_strided_slice %16#2 {offsets = [0, 0], sizes = [8, 1], strides = [1, 1]} : vector<8x3xf32> to vector<8x1xf32>
    %23 = vector.broadcast %22 : vector<8x1xf32> to vector<8x64xf32>
    %24 = vector.broadcast %6 : vector<1x64xf32> to vector<8x64xf32>
    %25 = arith.subf %23, %24 : vector<8x64xf32>
    %26 = arith.mulf %25, %25 : vector<8x64xf32>
    %27 = arith.addf %21, %26 : vector<8x64xf32>
    %28 = vector.extract_strided_slice %16#2 {offsets = [0, 1], sizes = [8, 1], strides = [1, 1]} : vector<8x3xf32> to vector<8x1xf32>
    %29 = vector.broadcast %28 : vector<8x1xf32> to vector<8x64xf32>
    %30 = vector.broadcast %7 : vector<1x64xf32> to vector<8x64xf32>
    %31 = arith.subf %29, %30 : vector<8x64xf32>
    %32 = arith.mulf %31, %31 : vector<8x64xf32>
    %33 = arith.addf %27, %32 : vector<8x64xf32>
    %34 = vector.extract_strided_slice %16#2 {offsets = [0, 2], sizes = [8, 1], strides = [1, 1]} : vector<8x3xf32> to vector<8x1xf32>
    %35 = vector.broadcast %34 : vector<8x1xf32> to vector<8x64xf32>
    %36 = vector.broadcast %8 : vector<1x64xf32> to vector<8x64xf32>
    %37 = arith.subf %35, %36 : vector<8x64xf32>
    %38 = arith.mulf %37, %37 : vector<8x64xf32>
    %39 = arith.addf %33, %38 : vector<8x64xf32>
    %40 = tpu.bitcast %39 : vector<8x64xf32> -> vector<8x64xi32>
    %c-64_i32_9 = arith.constant -64 : i32
    %41 = vector.broadcast %c-64_i32_9 : i32 to vector<8x64xi32>
    %42 = arith.andi %40, %41 : vector<8x64xi32>
    %43 = arith.ori %42, %4 : vector<8x64xi32>
    %cst_10 = arith.constant dense<2147483647> : vector<8xi32>
    %44 = vector.multi_reduction <minsi>, %43, %cst_10 [1] : vector<8x64xi32> to vector<8xi32>
    %45 = vector.shape_cast %44 : vector<8xi32> to vector<8x1xi32>
    %46 = vector.broadcast %45 : vector<8x1xi32> to vector<8x64xi32>
    %47 = arith.cmpi eq, %43, %46 : vector<8x64xi32>
    %48 = arith.extui %47 : vector<8x64xi1> to vector<8x64xi32>
    %49 = arith.sitofp %48 : vector<8x64xi32> to vector<8x64xf32>
    %cst_11 = arith.constant dense<0.000000e+00> : vector<8x3xf32>
    %50 = tpu.matmul %49, %1, %cst_11 {dimension_numbers = #tpu.dot_dimension_numbers<[1], [0], [0], [1], [0, 0, 1, 1], [], []>} : vector<8x64xf32>, vector<64x3xf32>, vector<8x3xf32> -> vector<8x3xf32>
    %51 = arith.subf %50, %16#2 : vector<8x3xf32>
    %52 = tpu.transpose %51, [1, 0] : vector<8x3xf32> -> vector<3x8xf32>
    %c0_12 = arith.constant 0 : index
    %c0_13 = arith.constant 0 : index
    %c0_14 = arith.constant 0 : index
    %c0_15 = arith.constant 0 : index
    %53 = vector.load %arg3[%c0_12, %c0_13, %c0_14, %c0_15] : memref<1x8x3x8xf32, #tpu.memory_space<vmem>>, vector<1x1x3x8xf32>
    %54 = vector.shape_cast %53 : vector<1x1x3x8xf32> to vector<3x8xf32>
    %55 = vector.shape_cast %52 : vector<3x8xf32> to vector<1x1x3x8xf32>
    tpu.vector_store %arg3[%c0_12, %c0_13, %c0_14, %c0_15], %55 {strides = array<i32>} : memref<1x8x3x8xf32, #tpu.memory_space<vmem>>, vector<1x1x3x8xf32>,
    %c2147483647_i32 = arith.constant 2147483647 : i32
    %56 = vector.broadcast %c2147483647_i32 : i32 to vector<8x64xi32>
    %57 = arith.select %47, %56, %43 : vector<8x64xi1>, vector<8x64xi32>
    %cst_16 = arith.constant dense<2147483647> : vector<8xi32>
    %58 = vector.multi_reduction <minsi>, %57, %cst_16 [1] : vector<8x64xi32> to vector<8xi32>
    %59 = vector.shape_cast %58 : vector<8xi32> to vector<8x1xi32>
    %60 = vector.broadcast %59 : vector<8x1xi32> to vector<8x64xi32>
    %61 = arith.cmpi eq, %57, %60 : vector<8x64xi32>
    %62 = arith.extui %61 : vector<8x64xi1> to vector<8x64xi32>
    %63 = arith.sitofp %62 : vector<8x64xi32> to vector<8x64xf32>
    %cst_17 = arith.constant dense<0.000000e+00> : vector<8x3xf32>
    %64 = tpu.matmul %63, %1, %cst_17 {dimension_numbers = #tpu.dot_dimension_numbers<[1], [0], [0], [1], [0, 0, 1, 1], [], []>} : vector<8x64xf32>, vector<64x3xf32>, vector<8x3xf32> -> vector<8x3xf32>
    %65 = arith.subf %64, %16#2 : vector<8x3xf32>
    %66 = tpu.transpose %65, [1, 0] : vector<8x3xf32> -> vector<3x8xf32>
    %c0_18 = arith.constant 0 : index
    %c1 = arith.constant 1 : index
    %c0_19 = arith.constant 0 : index
    %c0_20 = arith.constant 0 : index
    %67 = vector.load %arg3[%c0_18, %c1, %c0_19, %c0_20] : memref<1x8x3x8xf32, #tpu.memory_space<vmem>>, vector<1x1x3x8xf32>
    %68 = vector.shape_cast %67 : vector<1x1x3x8xf32> to vector<3x8xf32>
    %69 = vector.shape_cast %66 : vector<3x8xf32> to vector<1x1x3x8xf32>
    tpu.vector_store %arg3[%c0_18, %c1, %c0_19, %c0_20], %69 {strides = array<i32>} : memref<1x8x3x8xf32, #tpu.memory_space<vmem>>, vector<1x1x3x8xf32>,
    %c2147483647_i32_21 = arith.constant 2147483647 : i32
    %70 = vector.broadcast %c2147483647_i32_21 : i32 to vector<8x64xi32>
    %71 = arith.select %61, %70, %57 : vector<8x64xi1>, vector<8x64xi32>
    %cst_22 = arith.constant dense<2147483647> : vector<8xi32>
    %72 = vector.multi_reduction <minsi>, %71, %cst_22 [1] : vector<8x64xi32> to vector<8xi32>
    %73 = vector.shape_cast %72 : vector<8xi32> to vector<8x1xi32>
    %74 = vector.broadcast %73 : vector<8x1xi32> to vector<8x64xi32>
    %75 = arith.cmpi eq, %71, %74 : vector<8x64xi32>
    %76 = arith.extui %75 : vector<8x64xi1> to vector<8x64xi32>
    %77 = arith.sitofp %76 : vector<8x64xi32> to vector<8x64xf32>
    %cst_23 = arith.constant dense<0.000000e+00> : vector<8x3xf32>
    %78 = tpu.matmul %77, %1, %cst_23 {dimension_numbers = #tpu.dot_dimension_numbers<[1], [0], [0], [1], [0, 0, 1, 1], [], []>} : vector<8x64xf32>, vector<64x3xf32>, vector<8x3xf32> -> vector<8x3xf32>
    %79 = arith.subf %78, %16#2 : vector<8x3xf32>
    %80 = tpu.transpose %79, [1, 0] : vector<8x3xf32> -> vector<3x8xf32>
    %c0_24 = arith.constant 0 : index
    %c2 = arith.constant 2 : index
    %c0_25 = arith.constant 0 : index
    %c0_26 = arith.constant 0 : index
    %81 = vector.load %arg3[%c0_24, %c2, %c0_25, %c0_26] : memref<1x8x3x8xf32, #tpu.memory_space<vmem>>, vector<1x1x3x8xf32>
    %82 = vector.shape_cast %81 : vector<1x1x3x8xf32> to vector<3x8xf32>
    %83 = vector.shape_cast %80 : vector<3x8xf32> to vector<1x1x3x8xf32>
    tpu.vector_store %arg3[%c0_24, %c2, %c0_25, %c0_26], %83 {strides = array<i32>} : memref<1x8x3x8xf32, #tpu.memory_space<vmem>>, vector<1x1x3x8xf32>,
    %c2147483647_i32_27 = arith.constant 2147483647 : i32
    %84 = vector.broadcast %c2147483647_i32_27 : i32 to vector<8x64xi32>
    %85 = arith.select %75, %84, %71 : vector<8x64xi1>, vector<8x64xi32>
    %cst_28 = arith.constant dense<2147483647> : vector<8xi32>
    %86 = vector.multi_reduction <minsi>, %85, %cst_28 [1] : vector<8x64xi32> to vector<8xi32>
    %87 = vector.shape_cast %86 : vector<8xi32> to vector<8x1xi32>
    %88 = vector.broadcast %87 : vector<8x1xi32> to vector<8x64xi32>
    %89 = arith.cmpi eq, %85, %88 : vector<8x64xi32>
    %90 = arith.extui %89 : vector<8x64xi1> to vector<8x64xi32>
    %91 = arith.sitofp %90 : vector<8x64xi32> to vector<8x64xf32>
    %cst_29 = arith.constant dense<0.000000e+00> : vector<8x3xf32>
    %92 = tpu.matmul %91, %1, %cst_29 {dimension_numbers = #tpu.dot_dimension_numbers<[1], [0], [0], [1], [0, 0, 1, 1], [], []>} : vector<8x64xf32>, vector<64x3xf32>, vector<8x3xf32> -> vector<8x3xf32>
    %93 = arith.subf %92, %16#2 : vector<8x3xf32>
    %94 = tpu.transpose %93, [1, 0] : vector<8x3xf32> -> vector<3x8xf32>
    %c0_30 = arith.constant 0 : index
    %c3 = arith.constant 3 : index
    %c0_31 = arith.constant 0 : index
    %c0_32 = arith.constant 0 : index
    %95 = vector.load %arg3[%c0_30, %c3, %c0_31, %c0_32] : memref<1x8x3x8xf32, #tpu.memory_space<vmem>>, vector<1x1x3x8xf32>
    %96 = vector.shape_cast %95 : vector<1x1x3x8xf32> to vector<3x8xf32>
    %97 = vector.shape_cast %94 : vector<3x8xf32> to vector<1x1x3x8xf32>
    tpu.vector_store %arg3[%c0_30, %c3, %c0_31, %c0_32], %97 {strides = array<i32>} : memref<1x8x3x8xf32, #tpu.memory_space<vmem>>, vector<1x1x3x8xf32>,
    %c2147483647_i32_33 = arith.constant 2147483647 : i32
    %98 = vector.broadcast %c2147483647_i32_33 : i32 to vector<8x64xi32>
    %99 = arith.select %89, %98, %85 : vector<8x64xi1>, vector<8x64xi32>
    %cst_34 = arith.constant dense<2147483647> : vector<8xi32>
    %100 = vector.multi_reduction <minsi>, %99, %cst_34 [1] : vector<8x64xi32> to vector<8xi32>
    %101 = vector.shape_cast %100 : vector<8xi32> to vector<8x1xi32>
    %102 = vector.broadcast %101 : vector<8x1xi32> to vector<8x64xi32>
    %103 = arith.cmpi eq, %99, %102 : vector<8x64xi32>
    %104 = arith.extui %103 : vector<8x64xi1> to vector<8x64xi32>
    %105 = arith.sitofp %104 : vector<8x64xi32> to vector<8x64xf32>
    %cst_35 = arith.constant dense<0.000000e+00> : vector<8x3xf32>
    %106 = tpu.matmul %105, %1, %cst_35 {dimension_numbers = #tpu.dot_dimension_numbers<[1], [0], [0], [1], [0, 0, 1, 1], [], []>} : vector<8x64xf32>, vector<64x3xf32>, vector<8x3xf32> -> vector<8x3xf32>
    %107 = arith.subf %106, %16#2 : vector<8x3xf32>
    %108 = tpu.transpose %107, [1, 0] : vector<8x3xf32> -> vector<3x8xf32>
    %c0_36 = arith.constant 0 : index
    %c4 = arith.constant 4 : index
    %c0_37 = arith.constant 0 : index
    %c0_38 = arith.constant 0 : index
    %109 = vector.load %arg3[%c0_36, %c4, %c0_37, %c0_38] : memref<1x8x3x8xf32, #tpu.memory_space<vmem>>, vector<1x1x3x8xf32>
    %110 = vector.shape_cast %109 : vector<1x1x3x8xf32> to vector<3x8xf32>
    %111 = vector.shape_cast %108 : vector<3x8xf32> to vector<1x1x3x8xf32>
    tpu.vector_store %arg3[%c0_36, %c4, %c0_37, %c0_38], %111 {strides = array<i32>} : memref<1x8x3x8xf32, #tpu.memory_space<vmem>>, vector<1x1x3x8xf32>,
    %c2147483647_i32_39 = arith.constant 2147483647 : i32
    %112 = vector.broadcast %c2147483647_i32_39 : i32 to vector<8x64xi32>
    %113 = arith.select %103, %112, %99 : vector<8x64xi1>, vector<8x64xi32>
    %cst_40 = arith.constant dense<2147483647> : vector<8xi32>
    %114 = vector.multi_reduction <minsi>, %113, %cst_40 [1] : vector<8x64xi32> to vector<8xi32>
    %115 = vector.shape_cast %114 : vector<8xi32> to vector<8x1xi32>
    %116 = vector.broadcast %115 : vector<8x1xi32> to vector<8x64xi32>
    %117 = arith.cmpi eq, %113, %116 : vector<8x64xi32>
    %118 = arith.extui %117 : vector<8x64xi1> to vector<8x64xi32>
    %119 = arith.sitofp %118 : vector<8x64xi32> to vector<8x64xf32>
    %cst_41 = arith.constant dense<0.000000e+00> : vector<8x3xf32>
    %120 = tpu.matmul %119, %1, %cst_41 {dimension_numbers = #tpu.dot_dimension_numbers<[1], [0], [0], [1], [0, 0, 1, 1], [], []>} : vector<8x64xf32>, vector<64x3xf32>, vector<8x3xf32> -> vector<8x3xf32>
    %121 = arith.subf %120, %16#2 : vector<8x3xf32>
    %122 = tpu.transpose %121, [1, 0] : vector<8x3xf32> -> vector<3x8xf32>
    %c0_42 = arith.constant 0 : index
    %c5 = arith.constant 5 : index
    %c0_43 = arith.constant 0 : index
    %c0_44 = arith.constant 0 : index
    %123 = vector.load %arg3[%c0_42, %c5, %c0_43, %c0_44] : memref<1x8x3x8xf32, #tpu.memory_space<vmem>>, vector<1x1x3x8xf32>
    %124 = vector.shape_cast %123 : vector<1x1x3x8xf32> to vector<3x8xf32>
    %125 = vector.shape_cast %122 : vector<3x8xf32> to vector<1x1x3x8xf32>
    tpu.vector_store %arg3[%c0_42, %c5, %c0_43, %c0_44], %125 {strides = array<i32>} : memref<1x8x3x8xf32, #tpu.memory_space<vmem>>, vector<1x1x3x8xf32>,
    %c2147483647_i32_45 = arith.constant 2147483647 : i32
    %126 = vector.broadcast %c2147483647_i32_45 : i32 to vector<8x64xi32>
    %127 = arith.select %117, %126, %113 : vector<8x64xi1>, vector<8x64xi32>
    %cst_46 = arith.constant dense<2147483647> : vector<8xi32>
    %128 = vector.multi_reduction <minsi>, %127, %cst_46 [1] : vector<8x64xi32> to vector<8xi32>
    %129 = vector.shape_cast %128 : vector<8xi32> to vector<8x1xi32>
    %130 = vector.broadcast %129 : vector<8x1xi32> to vector<8x64xi32>
    %131 = arith.cmpi eq, %127, %130 : vector<8x64xi32>
    %132 = arith.extui %131 : vector<8x64xi1> to vector<8x64xi32>
    %133 = arith.sitofp %132 : vector<8x64xi32> to vector<8x64xf32>
    %cst_47 = arith.constant dense<0.000000e+00> : vector<8x3xf32>
    %134 = tpu.matmul %133, %1, %cst_47 {dimension_numbers = #tpu.dot_dimension_numbers<[1], [0], [0], [1], [0, 0, 1, 1], [], []>} : vector<8x64xf32>, vector<64x3xf32>, vector<8x3xf32> -> vector<8x3xf32>
    %135 = arith.subf %134, %16#2 : vector<8x3xf32>
    %136 = tpu.transpose %135, [1, 0] : vector<8x3xf32> -> vector<3x8xf32>
    %c0_48 = arith.constant 0 : index
    %c6 = arith.constant 6 : index
    %c0_49 = arith.constant 0 : index
    %c0_50 = arith.constant 0 : index
    %137 = vector.load %arg3[%c0_48, %c6, %c0_49, %c0_50] : memref<1x8x3x8xf32, #tpu.memory_space<vmem>>, vector<1x1x3x8xf32>
    %138 = vector.shape_cast %137 : vector<1x1x3x8xf32> to vector<3x8xf32>
    %139 = vector.shape_cast %136 : vector<3x8xf32> to vector<1x1x3x8xf32>
    tpu.vector_store %arg3[%c0_48, %c6, %c0_49, %c0_50], %139 {strides = array<i32>} : memref<1x8x3x8xf32, #tpu.memory_space<vmem>>, vector<1x1x3x8xf32>,
    %c2147483647_i32_51 = arith.constant 2147483647 : i32
    %140 = vector.broadcast %c2147483647_i32_51 : i32 to vector<8x64xi32>
    %141 = arith.select %131, %140, %127 : vector<8x64xi1>, vector<8x64xi32>
    %cst_52 = arith.constant dense<2147483647> : vector<8xi32>
    %142 = vector.multi_reduction <minsi>, %141, %cst_52 [1] : vector<8x64xi32> to vector<8xi32>
    %143 = vector.shape_cast %142 : vector<8xi32> to vector<8x1xi32>
    %144 = vector.broadcast %143 : vector<8x1xi32> to vector<8x64xi32>
    %145 = arith.cmpi eq, %141, %144 : vector<8x64xi32>
    %146 = arith.extui %145 : vector<8x64xi1> to vector<8x64xi32>
    %147 = arith.sitofp %146 : vector<8x64xi32> to vector<8x64xf32>
    %cst_53 = arith.constant dense<0.000000e+00> : vector<8x3xf32>
    %148 = tpu.matmul %147, %1, %cst_53 {dimension_numbers = #tpu.dot_dimension_numbers<[1], [0], [0], [1], [0, 0, 1, 1], [], []>} : vector<8x64xf32>, vector<64x3xf32>, vector<8x3xf32> -> vector<8x3xf32>
    %149 = arith.subf %148, %16#2 : vector<8x3xf32>
    %150 = tpu.transpose %149, [1, 0] : vector<8x3xf32> -> vector<3x8xf32>
    %c0_54 = arith.constant 0 : index
    %c7 = arith.constant 7 : index
    %c0_55 = arith.constant 0 : index
    %c0_56 = arith.constant 0 : index
    %151 = vector.load %arg3[%c0_54, %c7, %c0_55, %c0_56] : memref<1x8x3x8xf32, #tpu.memory_space<vmem>>, vector<1x1x3x8xf32>
    %152 = vector.shape_cast %151 : vector<1x1x3x8xf32> to vector<3x8xf32>
    %153 = vector.shape_cast %150 : vector<3x8xf32> to vector<1x1x3x8xf32>
    tpu.vector_store %arg3[%c0_54, %c7, %c0_55, %c0_56], %153 {strides = array<i32>} : memref<1x8x3x8xf32, #tpu.memory_space<vmem>>, vector<1x1x3x8xf32>,
    return
  }
  func.func @transform_0(%arg0: i32) -> (i32, i32, i32) {
    %c0_i32 = arith.constant 0 : i32
    %c0_i32_0 = arith.constant 0 : i32
    %c0_i32_1 = arith.constant 0 : i32
    return %arg0, %c0_i32, %c0_i32_0 : i32, i32, i32
  }
  func.func @transform_1(%arg0: i32) -> (i32, i32, i32) {
    %c0_i32 = arith.constant 0 : i32
    %c0_i32_0 = arith.constant 0 : i32
    %c0_i32_1 = arith.constant 0 : i32
    return %arg0, %c0_i32, %c0_i32_0 : i32, i32, i32
  }
  func.func @transform_2(%arg0: i32) -> (i32, i32, i32, i32) {
    %c0_i32 = arith.constant 0 : i32
    %c0_i32_0 = arith.constant 0 : i32
    %c0_i32_1 = arith.constant 0 : i32
    %c0_i32_2 = arith.constant 0 : i32
    return %arg0, %c0_i32, %c0_i32_0, %c0_i32_1 : i32, i32, i32, i32
  }
}

</mosaic_0001>

<llo_original>
// kernel: _lambda_.1
$region0: #{_lambda_.1}
  #allocation0 [shape = 'u32[]', space=smem, size = 0x4, offset = 0x4, fixed_abs, tag = 'smem constant byte address 0x4 - core index']
  #allocation1 [shape = 'u32[144,128]{1,0:T(1,128)}', space=vmem, size = 0x12000, scoped, tag = 'internal scratch']
  %s0 = inlined_call_operand.vmem [shape: f32[2,64,3], index: 0, kind: input, shape index: {}]
  %s1 = inlined_call_operand.vmem [shape: f32[2,3,8], index: 1, kind: output, shape index: {0}]
  %s2 = inlined_call_operand.vmem [shape: f32[2,8,3,8], index: 2, kind: output, shape index: {1}]
  %3 = xla_tuple %s1, %s2
  %s4 = sld [smem:[#allocation0]]
  $region52: #{_lambda_.1} parent=0
    _
  %s6 = ssub.s32 1, %s4
  %s7 = scalar_select 0, %s6, %s4
  loop: start=0, step=1, limit=4
  $region2: #{_lambda_.1} parent=0 // loop_pre_header
    _
  $region3: #{_lambda_.1} parent=0 // loop_header
    %s9 = sphi 0, %s13
    %p10 = scmp.ge.s32.totalorder %s9, 4
    %s19 = sphi 0, %s21
    %s22 = sphi 0, %s19
    %s23 = sphi 0, %s22
    %s39 = sphi 0, %s23
    %s45 = sphi 0, %s47
    %s48 = sphi 0, %s45
    %s49 = sphi 0, %s48
    %s65 = sphi 0, %s49
    %s71 = sphi 0, %s73
    %s74 = sphi 0, %s71
    %s75 = sphi 0, %s74
    %s91 = sphi 0, %s75
  $region4: #{_lambda_.1} parent=0 // loop_header_branch
    %12 = sbr.rel (%p10) target = $region8
  $region5: #{_lambda_.1} parent=0 // loop_body
    %s14 = ssub.s32 %s9, 1
    %s15 = ssub.s32 %s9, 2
    %s16 = sadd.s32 %s9, 1
    %s17 = ssub.s32 %s9, %s16
    %p18 = scmp.eq.s32.totalorder %s17, 0
    %s20 = sadd.s32 %s19, 1
    %s21 = scalar_select %p18, %s19, %s20
    %p24 = pneg %p18
    %p25 = scmp.eq.s32.totalorder %s9, 1
    %p26 = por %p24, %p25
    %p27 = scmp.ne.s32.totalorder %s19, %s22
    %p28 = scmp.eq.s32.totalorder %s9, 0
    %p29 = por %p27, %p28
    %p30 = scmp.ne.s32.totalorder %s19, %s22
    %p31 = scmp.eq.s32.totalorder %s14, 1
    %p32 = por %p30, %p31
    %p33 = scmp.ne.s32.totalorder %s22, %s23
    %p34 = scmp.eq.s32.totalorder %s14, 0
    %p35 = por %p33, %p34
    %p36 = scmp.ne.s32.totalorder %s22, %s23
    %p37 = scmp.eq.s32.totalorder %s15, 1
    %p38 = por %p36, %p37
    %p40 = scmp.ne.s32.totalorder %s23, %s39
    %p41 = scmp.eq.s32.totalorder %s15, 0
    %p42 = por %p40, %p41
    %s43 = ssub.s32 %s9, %s16
    %p44 = scmp.eq.s32.totalorder %s43, 0
    %s46 = sadd.s32 %s45, 1
    %s47 = scalar_select %p44, %s45, %s46
    %p50 = pneg %p44
    %p51 = scmp.eq.s32.totalorder %s9, 1
    %p52 = por %p50, %p51
    %p53 = scmp.ne.s32.totalorder %s45, %s48
    %p54 = scmp.eq.s32.totalorder %s9, 0
    %p55 = por %p53, %p54
    %p56 = scmp.ne.s32.totalorder %s45, %s48
    %p57 = scmp.eq.s32.totalorder %s14, 1
    %p58 = por %p56, %p57
    %p59 = scmp.ne.s32.totalorder %s48, %s49
    %p60 = scmp.eq.s32.totalorder %s14, 0
    %p61 = por %p59, %p60
    %p62 = scmp.ne.s32.totalorder %s48, %s49
    %p63 = scmp.eq.s32.totalorder %s15, 1
    %p64 = por %p62, %p63
    %p66 = scmp.ne.s32.totalorder %s49, %s65
    %p67 = scmp.eq.s32.totalorder %s15, 0
    %p68 = por %p66, %p67
    %s69 = ssub.s32 %s9, %s16
    %p70 = scmp.eq.s32.totalorder %s69, 0
    %s72 = sadd.s32 %s71, 1
    %s73 = scalar_select %p70, %s71, %s72
    %p76 = pneg %p70
    %p77 = scmp.eq.s32.totalorder %s9, 1
    %p78 = por %p76, %p77
    %p79 = scmp.ne.s32.totalorder %s71, %s74
    %p80 = scmp.eq.s32.totalorder %s9, 0
    %p81 = por %p79, %p80
    %p82 = scmp.ne.s32.totalorder %s71, %s74
    %p83 = scmp.eq.s32.totalorder %s14, 1
    %p84 = por %p82, %p83
    %p85 = scmp.ne.s32.totalorder %s74, %s75
    %p86 = scmp.eq.s32.totalorder %s14, 0
    %p87 = por %p85, %p86
    %p88 = scmp.ne.s32.totalorder %s74, %s75
    %p89 = scmp.eq.s32.totalorder %s15, 1
    %p90 = por %p88, %p89
    %p92 = scmp.ne.s32.totalorder %s75, %s91
    %p93 = scmp.eq.s32.totalorder %s15, 0
    %p94 = por %p92, %p93
    %p95 = scmp.le.s32.totalorder 1, %s9
    %p96 = scmp.lt.s32.totalorder %s9, 3
    %p97 = pnand %p95, %p96
    %p98 = pneg %p97
    // Predicated region
    $region9: #{_lambda_.1} parent=5 // pred_check
      _
    $region10: #{_lambda_.1} parent=5 // pred_check_branch
      %100 = sbr.rel (%p97) target = $region12
    $region11: #{_lambda_.1} parent=5 // pred_region
      %s101 = ssub.s32 %s9, 1
    $region12: #{_lambda_.1} parent=5 // pred_fallthru
      _
    %p102 = scmp.lt.s32.totalorder %s9, 2
    // Predicated region
    $region13: #{_lambda_.1} parent=5 // pred_check
      %p103 = pneg %p102
    $region14: #{_lambda_.1} parent=5 // pred_check_branch
      %105 = sbr.rel (%p103) target = $region16
    $region15: #{_lambda_.1} parent=5 // pred_region
      // Predicated region
      $region17: #{_lambda_.1} parent=15 // pred_check
        %p106 = pneg %p29
      $region18: #{_lambda_.1} parent=15 // pred_check_branch
        %108 = sbr.rel (%p106) target = $region20
      $region19: #{_lambda_.1} parent=15 // pred_region
        %p109 = scmp.lt.s32.totalorder %s9, 1
        %s110 = scalar_select %p109, %s9, 1
        %s111 = smul.addr %s110, 8
        %s112 = smul.addr %s111, 8
        %s113 = scalar_lea.vmem %s0, %s112
      $region20: #{_lambda_.1} parent=15 // pred_fallthru
        _
    $region16: #{_lambda_.1} parent=5 // pred_fallthru
      _
    %p114 = scmp.le.s32.totalorder 1, %s9
    %p115 = scmp.lt.s32.totalorder %s9, 3
    %p116 = pnand %p114, %p115
    %p117 = pneg %p116
    // Predicated region
    $region21: #{_lambda_.1} parent=5 // pred_check
      _
    $region22: #{_lambda_.1} parent=5 // pred_check_branch
      %119 = sbr.rel (%p116) target = $region24
    $region23: #{_lambda_.1} parent=5 // pred_region
      %s120 = ssub.s32 %s9, 1
      %p121 = scmp.lt.s32.totalorder %s14, 1
      %s122 = scalar_select %p121, %s14, 1
      %s123 = smul.addr %s122, 8
      %s124 = smul.addr %s123, 8
      %s125 = scalar_lea.vmem %s0, %s124
      %p126 = pneg %p35
      %p127 = pneg %p32
      %p128 = pneg %p61
      %p129 = pneg %p58
      %p130 = scmp.lt.s32.totalorder %s14, 1
      %s131 = scalar_select %p130, %s14, 1
      %s132 = smul.addr %s131, 4
      %s133 = scalar_lea.vmem %s1, %s132
      %p134 = pneg %p87
      %p135 = pneg %p84
      %p136 = scmp.lt.s32.totalorder %s14, 1
      %s137 = scalar_select %p136, %s14, 1
      %s138 = smul.addr %s137, 8
      %s139 = smul.addr %s138, 4
      %s140 = scalar_lea.vmem %s2, %s139
      %p141 = scmp.lt.s32.totalorder %s14, 1
      %s142 = scalar_select %p141, %s14, 1
      %s143 = smul.addr %s142, 8
      %s144 = smul.addr %s143, 8
      %s145 = scalar_lea.vmem %s0, %s144
      %p146 = scmp.lt.s32.totalorder %s14, 1
      %s147 = scalar_select %p146, %s14, 1
      %s148 = smul.addr %s147, 4
      %s149 = scalar_lea.vmem %s1, %s148
      %p150 = scmp.lt.s32.totalorder %s14, 1
      %s151 = scalar_select %p150, %s14, 1
      %s152 = smul.addr %s151, 8
      %s153 = smul.addr %s152, 4
      %s154 = scalar_lea.vmem %s2, %s153
      %v155 = vld [vmem:[%s145] sm:$0xff]
      %v156 = vld [vmem:[%s145 + $0x8] sm:$0xff]
      %v157 = vld [vmem:[%s145 + $0x10] sm:$0xff]
      %v158 = vld [vmem:[%s145 + $0x18] sm:$0xff]
      %v159 = vld [vmem:[%s145 + $0x20] sm:$0xff]
      %v160 = vld [vmem:[%s145 + $0x28] sm:$0xff]
      %v161 = vld [vmem:[%s145 + $0x30] sm:$0xff]
      %v162 = vld [vmem:[%s145 + $0x38] sm:$0xff]
      %163 = vxpose.xlu0.b32.start [1/16] %v155, 128
      %164 = vxpose.xlu0.b32.cont [2/16] %v156, 128
      %165 = vxpose.xlu0.b32.cont [3/16] %v157, 128
      %166 = vxpose.xlu0.b32.cont [4/16] %v158, 128
      %167 = vxpose.xlu0.b32.cont [5/16] %v159, 128
      %168 = vxpose.xlu0.b32.cont [6/16] %v160, 128
      %169 = vxpose.xlu0.b32.cont [7/16] %v161, 128
      %170 = vxpose.xlu0.b32.cont [8/16] %v162, 128
      %171 = vxpose.xlu0.b32.cont [9/16] 0.0, 128
      %172 = vxpose.xlu0.b32.cont [10/16] 0.0, 128
      %173 = vxpose.xlu0.b32.cont [11/16] 0.0, 128
      %174 = vxpose.xlu0.b32.cont [12/16] 0.0, 128
      %175 = vxpose.xlu0.b32.cont [13/16] 0.0, 128
      %176 = vxpose.xlu0.b32.cont [14/16] 0.0, 128
      %177 = vxpose.xlu0.b32.cont [15/16] 0.0, 128
      %178 = vxpose.xlu0.b32.end [16/16] 0.0, 128
      %v179 = vpop.trf.xlu0
      %v180 = vpop.trf.xlu0
      %v181 = vpop.trf.xlu0
      %v182 = vpop.trf.xlu0
      %v183 = vpop.trf.xlu0
      %v184 = vpop.trf.xlu0
      %v185 = vpop.trf.xlu0
      %v186 = vpop.trf.xlu0
      %v187 = vpop.trf.xlu0
      %v188 = vpop.trf.xlu0
      %v189 = vpop.trf.xlu0
      %v190 = vpop.trf.xlu0
      %v191 = vpop.trf.xlu0
      %v192 = vpop.trf.xlu0
      %v193 = vpop.trf.xlu0
      %v194 = vpop.trf.xlu0
      %v195 = vlaneseq
      %v196 = vand.u32 %v195, 127
      %v197 = vlaneseq
      %v198 = vshrl.u32 %v197, 7
      %vm199 = vcmp.eq.s32.totalorder %v196, 0
      %v200 = vsel %vm199, 1, 0
      %v201 = vcvt.s32.f32 %v200
      loop: start=0, step=1, limit=8
      $region25: #{_lambda_.1} parent=23 // loop_pre_header
        _
      $region26: #{_lambda_.1} parent=23 // loop_header
        %s203 = sphi 0, %s207
        %p204 = scmp.ge.s32.totalorder %s203, 8
        %v208 = vphi %v201, %v358
        %v209 = vphi inf, %v324
        %v210 = vphi 0.0, %v293
      $region27: #{_lambda_.1} parent=23 // loop_header_branch
        %206 = sbr.rel (%p204) target = $region31
      $region28: #{_lambda_.1} parent=23 // loop_body
        %vm211 = vcmask 523264
        %v213 = vsel %vm211, %v208, 0
        %215 = vmatprep.subr.mxu0 0.0
        %216 = vmatpush1.msra.mxu0 %v155
        %217 = vmatprep.subr.mxu0 0.0
        %218 = vmatpush1.msra.mxu0 %v156
        %219 = vmatprep.subr.mxu0 0.0
        %220 = vmatpush1.msra.mxu0 %v157
        %221 = vmatprep.subr.mxu0 0.0
        %222 = vmatpush1.msra.mxu0 %v158
        %223 = vmatprep.subr.mxu0 0.0
        %224 = vmatpush1.msra.mxu0 %v159
        %225 = vmatprep.subr.mxu0 0.0
        %226 = vmatpush1.msra.mxu0 %v160
        %227 = vmatprep.subr.mxu0 0.0
        %228 = vmatpush1.msra.mxu0 %v161
        %229 = vmatprep.subr.mxu0 0.0
        %230 = vmatpush1.msra.mxu0 %v162
        %231 = vmatprep.subr.mxu0 0.0
        %232 = vmatpush1.msra.mxu0 0.0
        %233 = vmatprep.subr.mxu0 0.0
        %234 = vmatpush1.msra.mxu0 0.0
        %235 = vmatprep.subr.mxu0 0.0
        %236 = vmatpush1.msra.mxu0 0.0
        %237 = vmatprep.subr.mxu0 0.0
        %238 = vmatpush1.msra.mxu0 0.0
        %239 = vmatprep.subr.mxu0 0.0
        %240 = vmatpush1.msra.mxu0 0.0
        %241 = vmatprep.subr.mxu0 0.0
        %242 = vmatpush1.msra.mxu0 0.0
        %243 = vmatprep.subr.mxu0 0.0
        %244 = vmatpush1.msra.mxu0 0.0
        %245 = vmatprep.subr.mxu0 0.0
        %246 = vmatpush1.msra.mxu0 0.0
        %247 = vmatprep.subr.mxu0 0.0
        %248 = vmatpush1.msra.mxu0 0.0
        %249 = vmatprep.subr.mxu0 0.0
        %250 = vmatpush1.msra.mxu0 0.0
        %251 = vmatprep.subr.mxu0 0.0
        %252 = vmatpush1.msra.mxu0 0.0
        %253 = vmatprep.subr.mxu0 0.0
        %254 = vmatpush1.msra.mxu0 0.0
        %255 = vmatprep.subr.mxu0 0.0
        %256 = vmatpush1.msra.mxu0 0.0
        %257 = vmatprep.subr.mxu0 0.0
        %258 = vmatpush1.msra.mxu0 0.0
        %259 = vmatprep.subr.mxu0 0.0
        %260 = vmatpush1.msra.mxu0 0.0
        %261 = vmatprep.subr.mxu0 0.0
        %262 = vmatpush1.msra.mxu0 0.0
        %263 = vmatprep.subr.mxu0 0.0
        %264 = vmatpush1.msra.mxu0 0.0
        %265 = vmatprep.subr.mxu0 0.0
        %266 = vmatpush1.msra.mxu0 0.0
        %267 = vmatprep.subr.mxu0 0.0
        %268 = vmatpush1.msra.mxu0 0.0
        %269 = vmatprep.subr.mxu0 0.0
        %270 = vmatpush1.msra.mxu0 0.0
        %271 = vmatprep.subr.mxu0 0.0
        %272 = vmatpush1.msra.mxu0 0.0
        %273 = vmatprep.subr.mxu0 0.0
        %274 = vmatpush1.msra.mxu0 0.0
        %275 = vmatprep.subr.mxu0 0.0
        %276 = vmatpush1.msra.mxu0 0.0
        %277 = vmatprep.subr.mxu0 0.0
        %278 = vmatpush1.msra.mxu0 0.0
        %279 = vmatprep.mubr.f32.mxu0 0.0
        %280 = vmatmul.mubr.f32.gmra.mrb[0].mxu0 %v213
        %v281 = vpop.f32.mrb[0].mxu0
        %v282 = vadd.f32 0.0, %v281
        %v283 = vpop.f32.mrb[0].mxu0
        %284 = vdwg.mxu0
        %v285 = vstv %s203
        %vm286 = vcmp.eq.s32.totalorder %v198, %v285
        %v287 = vsel %vm286, 1, 0
        %vm288 = vcmp.eq.s32.totalorder %v287, 1
        %v289 = vlaneseq
        %v290 = vshrl.u32 %v289, 7
        %v291 = vsub.s32 0, %v290
        %v292 = vrot.slane %v282, %v291
        %v293 = vsel %vm288, %v292, %v210
        %295 = vset.pattern.permute.xlu0 0
        %296 = vperm.xlu0 %295, %v282
        %v297 = vpop.permute.xlu0 %296
        %v299 = vsub.f32 %v179, %v297
        %v300 = vmul.f32 %v299, %v299
        %v301 = vadd.f32 %v300, 0.0
        %302 = vset.pattern.permute.xlu0 1
        %303 = vperm.xlu0 %302, %v282
        %v304 = vpop.permute.xlu0 %303
        %v305 = vrot.slane %v304, 7
        %v307 = vsub.f32 %v179, %v305
        %v308 = vmul.f32 %v307, %v307
        %v310 = vrot.slane %v308, 1
        %v312 = vadd.f32 %v301, %v310
        %313 = vset.pattern.permute.xlu0 2
        %314 = vperm.xlu0 %313, %v282
        %v315 = vpop.permute.xlu0 %314
        %v316 = vrot.slane %v315, 6
        %v318 = vsub.f32 %v179, %v316
        %v319 = vmul.f32 %v318, %v318
        %v321 = vrot.slane %v319, 2
        %v323 = vadd.f32 %v312, %v321
        %v324 = vmin.f32 %v209, %v323
        %v326 = vand.u32 %v324, 4294967232
        %v327 = vsub.s32 63, %v196
        %v328 = vor.u32 %v326, %v327
        %vm329 = vcmask 516096
        %v330 = vsel %vm329, %v328, 2147483648
        %v331 = vand.u32 %v330, 65535
        %v332 = vshra.s32 %v330, 16
        %v333 = vcvt.s32.f32 %v331
        %v334 = vcvt.s32.f32 %v332
        %335 = vmax.xlane.f32.xlu0 %v334
        %v336 = vpop.xlane.xlu0 %335
        %vm337 = vcmp.eq.f32.partialorder %v334, %v336
        %v338 = vsel %vm337, %v333, -inf
        %339 = vmax.xlane.f32.xlu0 %v338
        %v340 = vpop.xlane.xlu0 %339
        %v341 = vcvt.f32.s32 %v340
        %v342 = vcvt.f32.s32 %v336
        %v343 = vshll.u32 %v342, 16
        %v344 = vadd.s32 %v343, %v341
        %v345 = vrot.slane %v344, 4
        %vm346 = vcmp.gt.s32.totalorder %v344, %v345
        %v347 = vsel %vm346, %v344, %v345
        %v348 = vrot.slane %v347, 2
        %vm349 = vcmp.gt.s32.totalorder %v347, %v348
        %v350 = vsel %vm349, %v347, %v348
        %v351 = vrot.slane %v350, 1
        %vm352 = vcmp.gt.s32.totalorder %v350, %v351
        %v353 = vsel %vm352, %v350, %v351
        %s354 = vtos %v353
        %v355 = vstv %s354
        %vm356 = vcmp.eq.s32.totalorder %v328, %v355
        %v357 = vsel %vm356, 1, 0
        %v358 = vcvt.s32.f32 %v357
      $region29: #{_lambda_.1} parent=23 // loop_footer
        %s207 = sadd.s32 1, %s203
      $region30: #{_lambda_.1} parent=23 // loop_footer_branch
        %202 = sbr.rel target = $region26
      $region31: #{_lambda_.1} parent=23 // loop_exit
        _
      %359 = vxpose.xlu0.b32.start [1/16] %v210, 128
      %360 = vxpose.xlu0.b32.cont [2/16] 0.0, 128
      %361 = vxpose.xlu0.b32.cont [3/16] 0.0, 128
      %362 = vxpose.xlu0.b32.cont [4/16] 0.0, 128
      %363 = vxpose.xlu0.b32.cont [5/16] 0.0, 128
      %364 = vxpose.xlu0.b32.cont [6/16] 0.0, 128
      %365 = vxpose.xlu0.b32.cont [7/16] 0.0, 128
      %366 = vxpose.xlu0.b32.cont [8/16] 0.0, 128
      %367 = vxpose.xlu0.b32.cont [9/16] 0.0, 128
      %368 = vxpose.xlu0.b32.cont [10/16] 0.0, 128
      %369 = vxpose.xlu0.b32.cont [11/16] 0.0, 128
      %370 = vxpose.xlu0.b32.cont [12/16] 0.0, 128
      %371 = vxpose.xlu0.b32.cont [13/16] 0.0, 128
      %372 = vxpose.xlu0.b32.cont [14/16] 0.0, 128
      %373 = vxpose.xlu0.b32.cont [15/16] 0.0, 128
      %374 = vxpose.xlu0.b32.end [16/16] 0.0, 128
      %v375 = vpop.trf.xlu0
      %v376 = vpop.trf.xlu0
      %v377 = vpop.trf.xlu0
      %v378 = vpop.trf.xlu0
      %v379 = vpop.trf.xlu0
      %v380 = vpop.trf.xlu0
      %v381 = vpop.trf.xlu0
      %v382 = vpop.trf.xlu0
      %v383 = vpop.trf.xlu0
      %v384 = vpop.trf.xlu0
      %v385 = vpop.trf.xlu0
      %v386 = vpop.trf.xlu0
      %v387 = vpop.trf.xlu0
      %v388 = vpop.trf.xlu0
      %v389 = vpop.trf.xlu0
      %v390 = vpop.trf.xlu0
      %vm391 = vcmask 59392
      %392 = vst.msk [vmem:[%s149] sm:$0x7] %vm391, %v375
      %394 = vset.pattern.permute.xlu0 0
      %395 = vperm.xlu0 %394, %v210
      %v396 = vpop.permute.xlu0 %395
      %v398 = vlaneseq
      %v399 = vshrl.u32 %v398, 7
      %v400 = vsub.s32 0, %v399
      %v401 = vrot.slane %v179, %v400
      %v402 = vsub.f32 %v396, %v401
      %v403 = vmul.f32 %v402, %v402
      %v404 = vadd.f32 %v403, 0.0
      %405 = vset.pattern.permute.xlu0 1
      %406 = vperm.xlu0 %405, %v210
      %v407 = vpop.permute.xlu0 %406
      %v409 = vlaneseq
      %v410 = vshrl.u32 %v409, 7
      %v411 = vsub.s32 1, %v410
      %v412 = vrot.slane %v179, %v411
      %v413 = vsub.f32 %v407, %v412
      %v414 = vmul.f32 %v413, %v413
      %v415 = vadd.f32 %v404, %v414
      %416 = vset.pattern.permute.xlu0 2
      %417 = vperm.xlu0 %416, %v210
      %v418 = vpop.permute.xlu0 %417
      %v420 = vlaneseq
      %v421 = vshrl.u32 %v420, 7
      %v422 = vsub.s32 2, %v421
      %v423 = vrot.slane %v179, %v422
      %v424 = vsub.f32 %v418, %v423
      %v425 = vmul.f32 %v424, %v424
      %v426 = vadd.f32 %v415, %v425
      %v428 = vand.u32 %v426, 4294967232
      %v429 = vor.u32 %v428, %v196
      %vm430 = vcmask 523264
      %v431 = vsel %vm430, %v429, 2147483647
      %v432 = vand.u32 %v431, 65535
      %v433 = vshra.s32 %v431, 16
      %v434 = vcvt.s32.f32 %v432
      %v435 = vcvt.s32.f32 %v433
      %436 = vmin.xlane.f32.xlu0 %v435
      %v437 = vpop.xlane.xlu0 %436
      %vm438 = vcmp.eq.f32.partialorder %v435, %v437
      %v439 = vsel %vm438, %v434, inf
      %440 = vmin.xlane.f32.xlu0 %v439
      %v441 = vpop.xlane.xlu0 %440
      %v442 = vcvt.f32.s32 %v441
      %v443 = vcvt.f32.s32 %v437
      %v444 = vshll.u32 %v443, 16
      %v445 = vadd.s32 %v444, %v442
      %vm446 = vcmp.eq.s32.totalorder %v429, %v445
      %v447 = vsel %vm446, 1, 0
      %v448 = vcvt.s32.f32 %v447
      %v450 = vsel %vm430, %v448, 0
      %452 = vmatprep.subr.mxu0 0.0
      %453 = vmatpush1.msra.mxu0 %v155
      %454 = vmatprep.subr.mxu0 0.0
      %455 = vmatpush1.msra.mxu0 %v156
      %456 = vmatprep.subr.mxu0 0.0
      %457 = vmatpush1.msra.mxu0 %v157
      %458 = vmatprep.subr.mxu0 0.0
      %459 = vmatpush1.msra.mxu0 %v158
      %460 = vmatprep.subr.mxu0 0.0
      %461 = vmatpush1.msra.mxu0 %v159
      %462 = vmatprep.subr.mxu0 0.0
      %463 = vmatpush1.msra.mxu0 %v160
      %464 = vmatprep.subr.mxu0 0.0
      %465 = vmatpush1.msra.mxu0 %v161
      %466 = vmatprep.subr.mxu0 0.0
      %467 = vmatpush1.msra.mxu0 %v162
      %468 = vmatprep.subr.mxu0 0.0
      %469 = vmatpush1.msra.mxu0 0.0
      %470 = vmatprep.subr.mxu0 0.0
      %471 = vmatpush1.msra.mxu0 0.0
      %472 = vmatprep.subr.mxu0 0.0
      %473 = vmatpush1.msra.mxu0 0.0
      %474 = vmatprep.subr.mxu0 0.0
      %475 = vmatpush1.msra.mxu0 0.0
      %476 = vmatprep.subr.mxu0 0.0
      %477 = vmatpush1.msra.mxu0 0.0
      %478 = vmatprep.subr.mxu0 0.0
      %479 = vmatpush1.msra.mxu0 0.0
      %480 = vmatprep.subr.mxu0 0.0
      %481 = vmatpush1.msra.mxu0 0.0
      %482 = vmatprep.subr.mxu0 0.0
      %483 = vmatpush1.msra.mxu0 0.0
      %484 = vmatprep.subr.mxu0 0.0
      %485 = vmatpush1.msra.mxu0 0.0
      %486 = vmatprep.subr.mxu0 0.0
      %487 = vmatpush1.msra.mxu0 0.0
      %488 = vmatprep.subr.mxu0 0.0
      %489 = vmatpush1.msra.mxu0 0.0
      %490 = vmatprep.subr.mxu0 0.0
      %491 = vmatpush1.msra.mxu0 0.0
      %492 = vmatprep.subr.mxu0 0.0
      %493 = vmatpush1.msra.mxu0 0.0
      %494 = vmatprep.subr.mxu0 0.0
      %495 = vmatpush1.msra.mxu0 0.0
      %496 = vmatprep.subr.mxu0 0.0
      %497 = vmatpush1.msra.mxu0 0.0
      %498 = vmatprep.subr.mxu0 0.0
      %499 = vmatpush1.msra.mxu0 0.0
      %500 = vmatprep.subr.mxu0 0.0
      %501 = vmatpush1.msra.mxu0 0.0
      %502 = vmatprep.subr.mxu0 0.0
      %503 = vmatpush1.msra.mxu0 0.0
      %504 = vmatprep.subr.mxu0 0.0
      %505 = vmatpush1.msra.mxu0 0.0
      %506 = vmatprep.subr.mxu0 0.0
      %507 = vmatpush1.msra.mxu0 0.0
      %508 = vmatprep.subr.mxu0 0.0
      %509 = vmatpush1.msra.mxu0 0.0
      %510 = vmatprep.subr.mxu0 0.0
      %511 = vmatpush1.msra.mxu0 0.0
      %512 = vmatprep.subr.mxu0 0.0
      %513 = vmatpush1.msra.mxu0 0.0
      %514 = vmatprep.subr.mxu0 0.0
      %515 = vmatpush1.msra.mxu0 0.0
      %516 = vmatprep.mubr.f32.mxu0 0.0
      %517 = vmatmul.mubr.f32.gmra.mrb[0].mxu0 %v450
      %v518 = vpop.f32.mrb[0].mxu0
      %v519 = vadd.f32 0.0, %v518
      %v520 = vpop.f32.mrb[0].mxu0
      %521 = vdwg.mxu0
      %v522 = vsub.f32 %v519, %v210
      %523 = vxpose.xlu0.b32.start [1/16] %v522, 128
      %524 = vxpose.xlu0.b32.cont [2/16] 0.0, 128
      %525 = vxpose.xlu0.b32.cont [3/16] 0.0, 128
      %526 = vxpose.xlu0.b32.cont [4/16] 0.0, 128
      %527 = vxpose.xlu0.b32.cont [5/16] 0.0, 128
      %528 = vxpose.xlu0.b32.cont [6/16] 0.0, 128
      %529 = vxpose.xlu0.b32.cont [7/16] 0.0, 128
      %530 = vxpose.xlu0.b32.cont [8/16] 0.0, 128
      %531 = vxpose.xlu0.b32.cont [9/16] 0.0, 128
      %532 = vxpose.xlu0.b32.cont [10/16] 0.0, 128
      %533 = vxpose.xlu0.b32.cont [11/16] 0.0, 128
      %534 = vxpose.xlu0.b32.cont [12/16] 0.0, 128
      %535 = vxpose.xlu0.b32.cont [13/16] 0.0, 128
      %536 = vxpose.xlu0.b32.cont [14/16] 0.0, 128
      %537 = vxpose.xlu0.b32.cont [15/16] 0.0, 128
      %538 = vxpose.xlu0.b32.end [16/16] 0.0, 128
      %v539 = vpop.trf.xlu0
      %v540 = vpop.trf.xlu0
      %v541 = vpop.trf.xlu0
      %v542 = vpop.trf.xlu0
      %v543 = vpop.trf.xlu0
      %v544 = vpop.trf.xlu0
      %v545 = vpop.trf.xlu0
      %v546 = vpop.trf.xlu0
      %v547 = vpop.trf.xlu0
      %v548 = vpop.trf.xlu0
      %v549 = vpop.trf.xlu0
      %v550 = vpop.trf.xlu0
      %v551 = vpop.trf.xlu0
      %v552 = vpop.trf.xlu0
      %v553 = vpop.trf.xlu0
      %v554 = vpop.trf.xlu0
      %555 = vst.msk [vmem:[%s154] sm:$0x7] %vm391, %v539
      %v556 = vsel %vm446, 2147483647, %v429
      %v557 = vsel %vm430, %v556, 2147483647
      %v558 = vand.u32 %v557, 65535
      %v559 = vshra.s32 %v557, 16
      %v560 = vcvt.s32.f32 %v558
      %v561 = vcvt.s32.f32 %v559
      %562 = vmin.xlane.f32.xlu0 %v561
      %v563 = vpop.xlane.xlu0 %562
      %vm564 = vcmp.eq.f32.partialorder %v561, %v563
      %v565 = vsel %vm564, %v560, inf
      %566 = vmin.xlane.f32.xlu0 %v565
      %v567 = vpop.xlane.xlu0 %566
      %v568 = vcvt.f32.s32 %v567
      %v569 = vcvt.f32.s32 %v563
      %v570 = vshll.u32 %v569, 16
      %v571 = vadd.s32 %v570, %v568
      %vm572 = vcmp.eq.s32.totalorder %v556, %v571
      %v573 = vsel %vm572, 1, 0
      %v574 = vcvt.s32.f32 %v573
      %v576 = vsel %vm430, %v574, 0
      %578 = vmatprep.subr.mxu0 0.0
      %579 = vmatpush1.msra.mxu0 %v155
      %580 = vmatprep.subr.mxu0 0.0
      %581 = vmatpush1.msra.mxu0 %v156
      %582 = vmatprep.subr.mxu0 0.0
      %583 = vmatpush1.msra.mxu0 %v157
      %584 = vmatprep.subr.mxu0 0.0
      %585 = vmatpush1.msra.mxu0 %v158
      %586 = vmatprep.subr.mxu0 0.0
      %587 = vmatpush1.msra.mxu0 %v159
      %588 = vmatprep.subr.mxu0 0.0
      %589 = vmatpush1.msra.mxu0 %v160
      %590 = vmatprep.subr.mxu0 0.0
      %591 = vmatpush1.msra.mxu0 %v161
      %592 = vmatprep.subr.mxu0 0.0
      %593 = vmatpush1.msra.mxu0 %v162
      %594 = vmatprep.subr.mxu0 0.0
      %595 = vmatpush1.msra.mxu0 0.0
      %596 = vmatprep.subr.mxu0 0.0
      %597 = vmatpush1.msra.mxu0 0.0
      %598 = vmatprep.subr.mxu0 0.0
      %599 = vmatpush1.msra.mxu0 0.0
      %600 = vmatprep.subr.mxu0 0.0
      %601 = vmatpush1.msra.mxu0 0.0
      %602 = vmatprep.subr.mxu0 0.0
      %603 = vmatpush1.msra.mxu0 0.0
      %604 = vmatprep.subr.mxu0 0.0
      %605 = vmatpush1.msra.mxu0 0.0
      %606 = vmatprep.subr.mxu0 0.0
      %607 = vmatpush1.msra.mxu0 0.0
      %608 = vmatprep.subr.mxu0 0.0
      %609 = vmatpush1.msra.mxu0 0.0
      %610 = vmatprep.subr.mxu0 0.0
      %611 = vmatpush1.msra.mxu0 0.0
      %612 = vmatprep.subr.mxu0 0.0
      %613 = vmatpush1.msra.mxu0 0.0
      %614 = vmatprep.subr.mxu0 0.0
      %615 = vmatpush1.msra.mxu0 0.0
      %616 = vmatprep.subr.mxu0 0.0
      %617 = vmatpush1.msra.mxu0 0.0
      %618 = vmatprep.subr.mxu0 0.0
      %619 = vmatpush1.msra.mxu0 0.0
      %620 = vmatprep.subr.mxu0 0.0
      %621 = vmatpush1.msra.mxu0 0.0
      %622 = vmatprep.subr.mxu0 0.0
      %623 = vmatpush1.msra.mxu0 0.0
      %624 = vmatprep.subr.mxu0 0.0
      %625 = vmatpush1.msra.mxu0 0.0
      %626 = vmatprep.subr.mxu0 0.0
      %627 = vmatpush1.msra.mxu0 0.0
      %628 = vmatprep.subr.mxu0 0.0
      %629 = vmatpush1.msra.mxu0 0.0
      %630 = vmatprep.subr.mxu0 0.0
      %631 = vmatpush1.msra.mxu0 0.0
      %632 = vmatprep.subr.mxu0 0.0
      %633 = vmatpush1.msra.mxu0 0.0
      %634 = vmatprep.subr.mxu0 0.0
      %635 = vmatpush1.msra.mxu0 0.0
      %636 = vmatprep.subr.mxu0 0.0
      %637 = vmatpush1.msra.mxu0 0.0
      %638 = vmatprep.subr.mxu0 0.0
      %639 = vmatpush1.msra.mxu0 0.0
      %640 = vmatprep.subr.mxu0 0.0
      %641 = vmatpush1.msra.mxu0 0.0
      %642 = vmatprep.mubr.f32.mxu0 0.0
      %643 = vmatmul.mubr.f32.gmra.mrb[0].mxu0 %v576
      %v644 = vpop.f32.mrb[0].mxu0
      %v645 = vadd.f32 0.0, %v644
      %v646 = vpop.f32.mrb[0].mxu0
      %647 = vdwg.mxu0
      %v648 = vsub.f32 %v645, %v210
      %649 = vxpose.xlu0.b32.start [1/16] %v648, 128
      %650 = vxpose.xlu0.b32.cont [2/16] 0.0, 128
      %651 = vxpose.xlu0.b32.cont [3/16] 0.0, 128
      %652 = vxpose.xlu0.b32.cont [4/16] 0.0, 128
      %653 = vxpose.xlu0.b32.cont [5/16] 0.0, 128
      %654 = vxpose.xlu0.b32.cont [6/16] 0.0, 128
      %655 = vxpose.xlu0.b32.cont [7/16] 0.0, 128
      %656 = vxpose.xlu0.b32.cont [8/16] 0.0, 128
      %657 = vxpose.xlu0.b32.cont [9/16] 0.0, 128
      %658 = vxpose.xlu0.b32.cont [10/16] 0.0, 128
      %659 = vxpose.xlu0.b32.cont [11/16] 0.0, 128
      %660 = vxpose.xlu0.b32.cont [12/16] 0.0, 128
      %661 = vxpose.xlu0.b32.cont [13/16] 0.0, 128
      %662 = vxpose.xlu0.b32.cont [14/16] 0.0, 128
      %663 = vxpose.xlu0.b32.cont [15/16] 0.0, 128
      %664 = vxpose.xlu0.b32.end [16/16] 0.0, 128
      %v665 = vpop.trf.xlu0
      %v666 = vpop.trf.xlu0
      %v667 = vpop.trf.xlu0
      %v668 = vpop.trf.xlu0
      %v669 = vpop.trf.xlu0
      %v670 = vpop.trf.xlu0
      %v671 = vpop.trf.xlu0
      %v672 = vpop.trf.xlu0
      %v673 = vpop.trf.xlu0
      %v674 = vpop.trf.xlu0
      %v675 = vpop.trf.xlu0
      %v676 = vpop.trf.xlu0
      %v677 = vpop.trf.xlu0
      %v678 = vpop.trf.xlu0
      %v679 = vpop.trf.xlu0
      %v680 = vpop.trf.xlu0
      %s681 = scalar_lea.vmem %s154, 4
      %682 = vst.msk [vmem:[%s681] sm:$0x7] %vm391, %v665
      %v683 = vsel %vm572, 2147483647, %v556
      %v684 = vsel %vm430, %v683, 2147483647
      %v685 = vand.u32 %v684, 65535
      %v686 = vshra.s32 %v684, 16
      %v687 = vcvt.s32.f32 %v685
      %v688 = vcvt.s32.f32 %v686
      %689 = vmin.xlane.f32.xlu0 %v688
      %v690 = vpop.xlane.xlu0 %689
      %vm691 = vcmp.eq.f32.partialorder %v688, %v690
      %v692 = vsel %vm691, %v687, inf
      %693 = vmin.xlane.f32.xlu0 %v692
      %v694 = vpop.xlane.xlu0 %693
      %v695 = vcvt.f32.s32 %v694
      %v696 = vcvt.f32.s32 %v690
      %v697 = vshll.u32 %v696, 16
      %v698 = vadd.s32 %v697, %v695
      %vm699 = vcmp.eq.s32.totalorder %v683, %v698
      %v700 = vsel %vm699, 1, 0
      %v701 = vcvt.s32.f32 %v700
      %v703 = vsel %vm430, %v701, 0
      %705 = vmatprep.subr.mxu0 0.0
      %706 = vmatpush1.msra.mxu0 %v155
      %707 = vmatprep.subr.mxu0 0.0
      %708 = vmatpush1.msra.mxu0 %v156
      %709 = vmatprep.subr.mxu0 0.0
      %710 = vmatpush1.msra.mxu0 %v157
      %711 = vmatprep.subr.mxu0 0.0
      %712 = vmatpush1.msra.mxu0 %v158
      %713 = vmatprep.subr.mxu0 0.0
      %714 = vmatpush1.msra.mxu0 %v159
      %715 = vmatprep.subr.mxu0 0.0
      %716 = vmatpush1.msra.mxu0 %v160
      %717 = vmatprep.subr.mxu0 0.0
      %718 = vmatpush1.msra.mxu0 %v161
      %719 = vmatprep.subr.mxu0 0.0
      %720 = vmatpush1.msra.mxu0 %v162
      %721 = vmatprep.subr.mxu0 0.0
      %722 = vmatpush1.msra.mxu0 0.0
      %723 = vmatprep.subr.mxu0 0.0
      %724 = vmatpush1.msra.mxu0 0.0
      %725 = vmatprep.subr.mxu0 0.0
      %726 = vmatpush1.msra.mxu0 0.0
      %727 = vmatprep.subr.mxu0 0.0
      %728 = vmatpush1.msra.mxu0 0.0
      %729 = vmatprep.subr.mxu0 0.0
      %730 = vmatpush1.msra.mxu0 0.0
      %731 = vmatprep.subr.mxu0 0.0
      %732 = vmatpush1.msra.mxu0 0.0
      %733 = vmatprep.subr.mxu0 0.0
      %734 = vmatpush1.msra.mxu0 0.0
      %735 = vmatprep.subr.mxu0 0.0
      %736 = vmatpush1.msra.mxu0 0.0
      %737 = vmatprep.subr.mxu0 0.0
      %738 = vmatpush1.msra.mxu0 0.0
      %739 = vmatprep.subr.mxu0 0.0
      %740 = vmatpush1.msra.mxu0 0.0
      %741 = vmatprep.subr.mxu0 0.0
      %742 = vmatpush1.msra.mxu0 0.0
      %743 = vmatprep.subr.mxu0 0.0
      %744 = vmatpush1.msra.mxu0 0.0
      %745 = vmatprep.subr.mxu0 0.0
      %746 = vmatpush1.msra.mxu0 0.0
      %747 = vmatprep.subr.mxu0 0.0
      %748 = vmatpush1.msra.mxu0 0.0
      %749 = vmatprep.subr.mxu0 0.0
      %750 = vmatpush1.msra.mxu0 0.0
      %751 = vmatprep.subr.mxu0 0.0
      %752 = vmatpush1.msra.mxu0 0.0
      %753 = vmatprep.subr.mxu0 0.0
      %754 = vmatpush1.msra.mxu0 0.0
      %755 = vmatprep.subr.mxu0 0.0
      %756 = vmatpush1.msra.mxu0 0.0
      %757 = vmatprep.subr.mxu0 0.0
      %758 = vmatpush1.msra.mxu0 0.0
      %759 = vmatprep.subr.mxu0 0.0
      %760 = vmatpush1.msra.mxu0 0.0
      %761 = vmatprep.subr.mxu0 0.0
      %762 = vmatpush1.msra.mxu0 0.0
      %763 = vmatprep.subr.mxu0 0.0
      %764 = vmatpush1.msra.mxu0 0.0
      %765 = vmatprep.subr.mxu0 0.0
      %766 = vmatpush1.msra.mxu0 0.0
      %767 = vmatprep.subr.mxu0 0.0
      %768 = vmatpush1.msra.mxu0 0.0
      %769 = vmatprep.mubr.f32.mxu0 0.0
      %770 = vmatmul.mubr.f32.gmra.mrb[0].mxu0 %v703
      %v771 = vpop.f32.mrb[0].mxu0
      %v772 = vadd.f32 0.0, %v771
      %v773 = vpop.f32.mrb[0].mxu0
      %774 = vdwg.mxu0
      %v775 = vsub.f32 %v772, %v210
      %776 = vxpose.xlu0.b32.start [1/16] %v775, 128
      %777 = vxpose.xlu0.b32.cont [2/16] 0.0, 128
      %778 = vxpose.xlu0.b32.cont [3/16] 0.0, 128
      %779 = vxpose.xlu0.b32.cont [4/16] 0.0, 128
      %780 = vxpose.xlu0.b32.cont [5/16] 0.0, 128
      %781 = vxpose.xlu0.b32.cont [6/16] 0.0, 128
      %782 = vxpose.xlu0.b32.cont [7/16] 0.0, 128
      %783 = vxpose.xlu0.b32.cont [8/16] 0.0, 128
      %784 = vxpose.xlu0.b32.cont [9/16] 0.0, 128
      %785 = vxpose.xlu0.b32.cont [10/16] 0.0, 128
      %786 = vxpose.xlu0.b32.cont [11/16] 0.0, 128
      %787 = vxpose.xlu0.b32.cont [12/16] 0.0, 128
      %788 = vxpose.xlu0.b32.cont [13/16] 0.0, 128
      %789 = vxpose.xlu0.b32.cont [14/16] 0.0, 128
      %790 = vxpose.xlu0.b32.cont [15/16] 0.0, 128
      %791 = vxpose.xlu0.b32.end [16/16] 0.0, 128
      %v792 = vpop.trf.xlu0
      %v793 = vpop.trf.xlu0
      %v794 = vpop.trf.xlu0
      %v795 = vpop.trf.xlu0
      %v796 = vpop.trf.xlu0
      %v797 = vpop.trf.xlu0
      %v798 = vpop.trf.xlu0
      %v799 = vpop.trf.xlu0
      %v800 = vpop.trf.xlu0
      %v801 = vpop.trf.xlu0
      %v802 = vpop.trf.xlu0
      %v803 = vpop.trf.xlu0
      %v804 = vpop.trf.xlu0
      %v805 = vpop.trf.xlu0
      %v806 = vpop.trf.xlu0
      %v807 = vpop.trf.xlu0
      %s808 = scalar_lea.vmem %s154, 8
      %809 = vst.msk [vmem:[%s808] sm:$0x7] %vm391, %v792
      %v810 = vsel %vm699, 2147483647, %v683
      %v811 = vsel %vm430, %v810, 2147483647
      %v812 = vand.u32 %v811, 65535
      %v813 = vshra.s32 %v811, 16
      %v814 = vcvt.s32.f32 %v812
      %v815 = vcvt.s32.f32 %v813
      %816 = vmin.xlane.f32.xlu0 %v815
      %v817 = vpop.xlane.xlu0 %816
      %vm818 = vcmp.eq.f32.partialorder %v815, %v817
      %v819 = vsel %vm818, %v814, inf
      %820 = vmin.xlane.f32.xlu0 %v819
      %v821 = vpop.xlane.xlu0 %820
      %v822 = vcvt.f32.s32 %v821
      %v823 = vcvt.f32.s32 %v817
      %v824 = vshll.u32 %v823, 16
      %v825 = vadd.s32 %v824, %v822
      %vm826 = vcmp.eq.s32.totalorder %v810, %v825
      %v827 = vsel %vm826, 1, 0
      %v828 = vcvt.s32.f32 %v827
      %v830 = vsel %vm430, %v828, 0
      %832 = vmatprep.subr.mxu0 0.0
      %833 = vmatpush1.msra.mxu0 %v155
      %834 = vmatprep.subr.mxu0 0.0
      %835 = vmatpush1.msra.mxu0 %v156
      %836 = vmatprep.subr.mxu0 0.0
      %837 = vmatpush1.msra.mxu0 %v157
      %838 = vmatprep.subr.mxu0 0.0
      %839 = vmatpush1.msra.mxu0 %v158
      %840 = vmatprep.subr.mxu0 0.0
      %841 = vmatpush1.msra.mxu0 %v159
      %842 = vmatprep.subr.mxu0 0.0
      %843 = vmatpush1.msra.mxu0 %v160
      %844 = vmatprep.subr.mxu0 0.0
      %845 = vmatpush1.msra.mxu0 %v161
      %846 = vmatprep.subr.mxu0 0.0
      %847 = vmatpush1.msra.mxu0 %v162
      %848 = vmatprep.subr.mxu0 0.0
      %849 = vmatpush1.msra.mxu0 0.0
      %850 = vmatprep.subr.mxu0 0.0
      %851 = vmatpush1.msra.mxu0 0.0
      %852 = vmatprep.subr.mxu0 0.0
      %853 = vmatpush1.msra.mxu0 0.0
      %854 = vmatprep.subr.mxu0 0.0
      %855 = vmatpush1.msra.mxu0 0.0
      %856 = vmatprep.subr.mxu0 0.0
      %857 = vmatpush1.msra.mxu0 0.0
      %858 = vmatprep.subr.mxu0 0.0
      %859 = vmatpush1.msra.mxu0 0.0
      %860 = vmatprep.subr.mxu0 0.0
      %861 = vmatpush1.msra.mxu0 0.0
      %862 = vmatprep.subr.mxu0 0.0
      %863 = vmatpush1.msra.mxu0 0.0
      %864 = vmatprep.subr.mxu0 0.0
      %865 = vmatpush1.msra.mxu0 0.0
      %866 = vmatprep.subr.mxu0 0.0
      %867 = vmatpush1.msra.mxu0 0.0
      %868 = vmatprep.subr.mxu0 0.0
      %869 = vmatpush1.msra.mxu0 0.0
      %870 = vmatprep.subr.mxu0 0.0
      %871 = vmatpush1.msra.mxu0 0.0
      %872 = vmatprep.subr.mxu0 0.0
      %873 = vmatpush1.msra.mxu0 0.0
      %874 = vmatprep.subr.mxu0 0.0
      %875 = vmatpush1.msra.mxu0 0.0
      %876 = vmatprep.subr.mxu0 0.0
      %877 = vmatpush1.msra.mxu0 0.0
      %878 = vmatprep.subr.mxu0 0.0
      %879 = vmatpush1.msra.mxu0 0.0
      %880 = vmatprep.subr.mxu0 0.0
      %881 = vmatpush1.msra.mxu0 0.0
      %882 = vmatprep.subr.mxu0 0.0
      %883 = vmatpush1.msra.mxu0 0.0
      %884 = vmatprep.subr.mxu0 0.0
      %885 = vmatpush1.msra.mxu0 0.0
      %886 = vmatprep.subr.mxu0 0.0
      %887 = vmatpush1.msra.mxu0 0.0
      %888 = vmatprep.subr.mxu0 0.0
      %889 = vmatpush1.msra.mxu0 0.0
      %890 = vmatprep.subr.mxu0 0.0
      %891 = vmatpush1.msra.mxu0 0.0
      %892 = vmatprep.subr.mxu0 0.0
      %893 = vmatpush1.msra.mxu0 0.0
      %894 = vmatprep.subr.mxu0 0.0
      %895 = vmatpush1.msra.mxu0 0.0
      %896 = vmatprep.mubr.f32.mxu0 0.0
      %897 = vmatmul.mubr.f32.gmra.mrb[0].mxu0 %v830
      %v898 = vpop.f32.mrb[0].mxu0
      %v899 = vadd.f32 0.0, %v898
      %v900 = vpop.f32.mrb[0].mxu0
      %901 = vdwg.mxu0
      %v902 = vsub.f32 %v899, %v210
      %903 = vxpose.xlu0.b32.start [1/16] %v902, 128
      %904 = vxpose.xlu0.b32.cont [2/16] 0.0, 128
      %905 = vxpose.xlu0.b32.cont [3/16] 0.0, 128
      %906 = vxpose.xlu0.b32.cont [4/16] 0.0, 128
      %907 = vxpose.xlu0.b32.cont [5/16] 0.0, 128
      %908 = vxpose.xlu0.b32.cont [6/16] 0.0, 128
      %909 = vxpose.xlu0.b32.cont [7/16] 0.0, 128
      %910 = vxpose.xlu0.b32.cont [8/16] 0.0, 128
      %911 = vxpose.xlu0.b32.cont [9/16] 0.0, 128
      %912 = vxpose.xlu0.b32.cont [10/16] 0.0, 128
      %913 = vxpose.xlu0.b32.cont [11/16] 0.0, 128
      %914 = vxpose.xlu0.b32.cont [12/16] 0.0, 128
      %915 = vxpose.xlu0.b32.cont [13/16] 0.0, 128
      %916 = vxpose.xlu0.b32.cont [14/16] 0.0, 128
      %917 = vxpose.xlu0.b32.cont [15/16] 0.0, 128
      %918 = vxpose.xlu0.b32.end [16/16] 0.0, 128
      %v919 = vpop.trf.xlu0
      %v920 = vpop.trf.xlu0
      %v921 = vpop.trf.xlu0
      %v922 = vpop.trf.xlu0
      %v923 = vpop.trf.xlu0
      %v924 = vpop.trf.xlu0
      %v925 = vpop.trf.xlu0
      %v926 = vpop.trf.xlu0
      %v927 = vpop.trf.xlu0
      %v928 = vpop.trf.xlu0
      %v929 = vpop.trf.xlu0
      %v930 = vpop.trf.xlu0
      %v931 = vpop.trf.xlu0
      %v932 = vpop.trf.xlu0
      %v933 = vpop.trf.xlu0
      %v934 = vpop.trf.xlu0
      %s935 = scalar_lea.vmem %s154, 12
      %936 = vst.msk [vmem:[%s935] sm:$0x7] %vm391, %v919
      %v937 = vsel %vm826, 2147483647, %v810
      %v938 = vsel %vm430, %v937, 2147483647
      %v939 = vand.u32 %v938, 65535
      %v940 = vshra.s32 %v938, 16
      %v941 = vcvt.s32.f32 %v939
      %v942 = vcvt.s32.f32 %v940
      %943 = vmin.xlane.f32.xlu0 %v942
      %v944 = vpop.xlane.xlu0 %943
      %vm945 = vcmp.eq.f32.partialorder %v942, %v944
      %v946 = vsel %vm945, %v941, inf
      %947 = vmin.xlane.f32.xlu0 %v946
      %v948 = vpop.xlane.xlu0 %947
      %v949 = vcvt.f32.s32 %v948
      %v950 = vcvt.f32.s32 %v944
      %v951 = vshll.u32 %v950, 16
      %v952 = vadd.s32 %v951, %v949
      %vm953 = vcmp.eq.s32.totalorder %v937, %v952
      %v954 = vsel %vm953, 1, 0
      %v955 = vcvt.s32.f32 %v954
      %v957 = vsel %vm430, %v955, 0
      %959 = vmatprep.subr.mxu0 0.0
      %960 = vmatpush1.msra.mxu0 %v155
      %961 = vmatprep.subr.mxu0 0.0
      %962 = vmatpush1.msra.mxu0 %v156
      %963 = vmatprep.subr.mxu0 0.0
      %964 = vmatpush1.msra.mxu0 %v157
      %965 = vmatprep.subr.mxu0 0.0
      %966 = vmatpush1.msra.mxu0 %v158
      %967 = vmatprep.subr.mxu0 0.0
      %968 = vmatpush1.msra.mxu0 %v159
      %969 = vmatprep.subr.mxu0 0.0
      %970 = vmatpush1.msra.mxu0 %v160
      %971 = vmatprep.subr.mxu0 0.0
      %972 = vmatpush1.msra.mxu0 %v161
      %973 = vmatprep.subr.mxu0 0.0
      %974 = vmatpush1.msra.mxu0 %v162
      %975 = vmatprep.subr.mxu0 0.0
      %976 = vmatpush1.msra.mxu0 0.0
      %977 = vmatprep.subr.mxu0 0.0
      %978 = vmatpush1.msra.mxu0 0.0
      %979 = vmatprep.subr.mxu0 0.0
      %980 = vmatpush1.msra.mxu0 0.0
      %981 = vmatprep.subr.mxu0 0.0
      %982 = vmatpush1.msra.mxu0 0.0
      %983 = vmatprep.subr.mxu0 0.0
      %984 = vmatpush1.msra.mxu0 0.0
      %985 = vmatprep.subr.mxu0 0.0
      %986 = vmatpush1.msra.mxu0 0.0
      %987 = vmatprep.subr.mxu0 0.0
      %988 = vmatpush1.msra.mxu0 0.0
      %989 = vmatprep.subr.mxu0 0.0
      %990 = vmatpush1.msra.mxu0 0.0
      %991 = vmatprep.subr.mxu0 0.0
      %992 = vmatpush1.msra.mxu0 0.0
      %993 = vmatprep.subr.mxu0 0.0
      %994 = vmatpush1.msra.mxu0 0.0
      %995 = vmatprep.subr.mxu0 0.0
      %996 = vmatpush1.msra.mxu0 0.0
      %997 = vmatprep.subr.mxu0 0.0
      %998 = vmatpush1.msra.mxu0 0.0
      %999 = vmatprep.subr.mxu0 0.0
      %1000 = vmatpush1.msra.mxu0 0.0
      %1001 = vmatprep.subr.mxu0 0.0
      %1002 = vmatpush1.msra.mxu0 0.0
      %1003 = vmatprep.subr.mxu0 0.0
      %1004 = vmatpush1.msra.mxu0 0.0
      %1005 = vmatprep.subr.mxu0 0.0
      %1006 = vmatpush1.msra.mxu0 0.0
      %1007 = vmatprep.subr.mxu0 0.0
      %1008 = vmatpush1.msra.mxu0 0.0
      %1009 = vmatprep.subr.mxu0 0.0
      %1010 = vmatpush1.msra.mxu0 0.0
      %1011 = vmatprep.subr.mxu0 0.0
      %1012 = vmatpush1.msra.mxu0 0.0
      %1013 = vmatprep.subr.mxu0 0.0
      %1014 = vmatpush1.msra.mxu0 0.0
      %1015 = vmatprep.subr.mxu0 0.0
      %1016 = vmatpush1.msra.mxu0 0.0
      %1017 = vmatprep.subr.mxu0 0.0
      %1018 = vmatpush1.msra.mxu0 0.0
      %1019 = vmatprep.subr.mxu0 0.0
      %1020 = vmatpush1.msra.mxu0 0.0
      %1021 = vmatprep.subr.mxu0 0.0
      %1022 = vmatpush1.msra.mxu0 0.0
      %1023 = vmatprep.mubr.f32.mxu0 0.0
      %1024 = vmatmul.mubr.f32.gmra.mrb[0].mxu0 %v957
      %v1025 = vpop.f32.mrb[0].mxu0
      %v1026 = vadd.f32 0.0, %v1025
      %v1027 = vpop.f32.mrb[0].mxu0
      %1028 = vdwg.mxu0
      %v1029 = vsub.f32 %v1026, %v210
      %1030 = vxpose.xlu0.b32.start [1/16] %v1029, 128
      %1031 = vxpose.xlu0.b32.cont [2/16] 0.0, 128
      %1032 = vxpose.xlu0.b32.cont [3/16] 0.0, 128
      %1033 = vxpose.xlu0.b32.cont [4/16] 0.0, 128
      %1034 = vxpose.xlu0.b32.cont [5/16] 0.0, 128
      %1035 = vxpose.xlu0.b32.cont [6/16] 0.0, 128
      %1036 = vxpose.xlu0.b32.cont [7/16] 0.0, 128
      %1037 = vxpose.xlu0.b32.cont [8/16] 0.0, 128
      %1038 = vxpose.xlu0.b32.cont [9/16] 0.0, 128
      %1039 = vxpose.xlu0.b32.cont [10/16] 0.0, 128
      %1040 = vxpose.xlu0.b32.cont [11/16] 0.0, 128
      %1041 = vxpose.xlu0.b32.cont [12/16] 0.0, 128
      %1042 = vxpose.xlu0.b32.cont [13/16] 0.0, 128
      %1043 = vxpose.xlu0.b32.cont [14/16] 0.0, 128
      %1044 = vxpose.xlu0.b32.cont [15/16] 0.0, 128
      %1045 = vxpose.xlu0.b32.end [16/16] 0.0, 128
      %v1046 = vpop.trf.xlu0
      %v1047 = vpop.trf.xlu0
      %v1048 = vpop.trf.xlu0
      %v1049 = vpop.trf.xlu0
      %v1050 = vpop.trf.xlu0
      %v1051 = vpop.trf.xlu0
      %v1052 = vpop.trf.xlu0
      %v1053 = vpop.trf.xlu0
      %v1054 = vpop.trf.xlu0
      %v1055 = vpop.trf.xlu0
      %v1056 = vpop.trf.xlu0
      %v1057 = vpop.trf.xlu0
      %v1058 = vpop.trf.xlu0
      %v1059 = vpop.trf.xlu0
      %v1060 = vpop.trf.xlu0
      %v1061 = vpop.trf.xlu0
      %s1062 = scalar_lea.vmem %s154, 16
      %1063 = vst.msk [vmem:[%s1062] sm:$0x7] %vm391, %v1046
      %v1064 = vsel %vm953, 2147483647, %v937
      %v1065 = vsel %vm430, %v1064, 2147483647
      %v1066 = vand.u32 %v1065, 65535
      %v1067 = vshra.s32 %v1065, 16
      %v1068 = vcvt.s32.f32 %v1066
      %v1069 = vcvt.s32.f32 %v1067
      %1070 = vmin.xlane.f32.xlu0 %v1069
      %v1071 = vpop.xlane.xlu0 %1070
      %vm1072 = vcmp.eq.f32.partialorder %v1069, %v1071
      %v1073 = vsel %vm1072, %v1068, inf
      %1074 = vmin.xlane.f32.xlu0 %v1073
      %v1075 = vpop.xlane.xlu0 %1074
      %v1076 = vcvt.f32.s32 %v1075
      %v1077 = vcvt.f32.s32 %v1071
      %v1078 = vshll.u32 %v1077, 16
      %v1079 = vadd.s32 %v1078, %v1076
      %vm1080 = vcmp.eq.s32.totalorder %v1064, %v1079
      %v1081 = vsel %vm1080, 1, 0
      %v1082 = vcvt.s32.f32 %v1081
      %v1084 = vsel %vm430, %v1082, 0
      %1086 = vmatprep.subr.mxu0 0.0
      %1087 = vmatpush1.msra.mxu0 %v155
      %1088 = vmatprep.subr.mxu0 0.0
      %1089 = vmatpush1.msra.mxu0 %v156
      %1090 = vmatprep.subr.mxu0 0.0
      %1091 = vmatpush1.msra.mxu0 %v157
      %1092 = vmatprep.subr.mxu0 0.0
      %1093 = vmatpush1.msra.mxu0 %v158
      %1094 = vmatprep.subr.mxu0 0.0
      %1095 = vmatpush1.msra.mxu0 %v159
      %1096 = vmatprep.subr.mxu0 0.0
      %1097 = vmatpush1.msra.mxu0 %v160
      %1098 = vmatprep.subr.mxu0 0.0
      %1099 = vmatpush1.msra.mxu0 %v161
      %1100 = vmatprep.subr.mxu0 0.0
      %1101 = vmatpush1.msra.mxu0 %v162
      %1102 = vmatprep.subr.mxu0 0.0
      %1103 = vmatpush1.msra.mxu0 0.0
      %1104 = vmatprep.subr.mxu0 0.0
      %1105 = vmatpush1.msra.mxu0 0.0
      %1106 = vmatprep.subr.mxu0 0.0
      %1107 = vmatpush1.msra.mxu0 0.0
      %1108 = vmatprep.subr.mxu0 0.0
      %1109 = vmatpush1.msra.mxu0 0.0
      %1110 = vmatprep.subr.mxu0 0.0
      %1111 = vmatpush1.msra.mxu0 0.0
      %1112 = vmatprep.subr.mxu0 0.0
      %1113 = vmatpush1.msra.mxu0 0.0
      %1114 = vmatprep.subr.mxu0 0.0
      %1115 = vmatpush1.msra.mxu0 0.0
      %1116 = vmatprep.subr.mxu0 0.0
      %1117 = vmatpush1.msra.mxu0 0.0
      %1118 = vmatprep.subr.mxu0 0.0
      %1119 = vmatpush1.msra.mxu0 0.0
      %1120 = vmatprep.subr.mxu0 0.0
      %1121 = vmatpush1.msra.mxu0 0.0
      %1122 = vmatprep.subr.mxu0 0.0
      %1123 = vmatpush1.msra.mxu0 0.0
      %1124 = vmatprep.subr.mxu0 0.0
      %1125 = vmatpush1.msra.mxu0 0.0
      %1126 = vmatprep.subr.mxu0 0.0
      %1127 = vmatpush1.msra.mxu0 0.0
      %1128 = vmatprep.subr.mxu0 0.0
      %1129 = vmatpush1.msra.mxu0 0.0
      %1130 = vmatprep.subr.mxu0 0.0
      %1131 = vmatpush1.msra.mxu0 0.0
      %1132 = vmatprep.subr.mxu0 0.0
      %1133 = vmatpush1.msra.mxu0 0.0
      %1134 = vmatprep.subr.mxu0 0.0
      %1135 = vmatpush1.msra.mxu0 0.0
      %1136 = vmatprep.subr.mxu0 0.0
      %1137 = vmatpush1.msra.mxu0 0.0
      %1138 = vmatprep.subr.mxu0 0.0
      %1139 = vmatpush1.msra.mxu0 0.0
      %1140 = vmatprep.subr.mxu0 0.0
      %1141 = vmatpush1.msra.mxu0 0.0
      %1142 = vmatprep.subr.mxu0 0.0
      %1143 = vmatpush1.msra.mxu0 0.0
      %1144 = vmatprep.subr.mxu0 0.0
      %1145 = vmatpush1.msra.mxu0 0.0
      %1146 = vmatprep.subr.mxu0 0.0
      %1147 = vmatpush1.msra.mxu0 0.0
      %1148 = vmatprep.subr.mxu0 0.0
      %1149 = vmatpush1.msra.mxu0 0.0
      %1150 = vmatprep.mubr.f32.mxu0 0.0
      %1151 = vmatmul.mubr.f32.gmra.mrb[0].mxu0 %v1084
      %v1152 = vpop.f32.mrb[0].mxu0
      %v1153 = vadd.f32 0.0, %v1152
      %v1154 = vpop.f32.mrb[0].mxu0
      %1155 = vdwg.mxu0
      %v1156 = vsub.f32 %v1153, %v210
      %1157 = vxpose.xlu0.b32.start [1/16] %v1156, 128
      %1158 = vxpose.xlu0.b32.cont [2/16] 0.0, 128
      %1159 = vxpose.xlu0.b32.cont [3/16] 0.0, 128
      %1160 = vxpose.xlu0.b32.cont [4/16] 0.0, 128
      %1161 = vxpose.xlu0.b32.cont [5/16] 0.0, 128
      %1162 = vxpose.xlu0.b32.cont [6/16] 0.0, 128
      %1163 = vxpose.xlu0.b32.cont [7/16] 0.0, 128
      %1164 = vxpose.xlu0.b32.cont [8/16] 0.0, 128
      %1165 = vxpose.xlu0.b32.cont [9/16] 0.0, 128
      %1166 = vxpose.xlu0.b32.cont [10/16] 0.0, 128
      %1167 = vxpose.xlu0.b32.cont [11/16] 0.0, 128
      %1168 = vxpose.xlu0.b32.cont [12/16] 0.0, 128
      %1169 = vxpose.xlu0.b32.cont [13/16] 0.0, 128
      %1170 = vxpose.xlu0.b32.cont [14/16] 0.0, 128
      %1171 = vxpose.xlu0.b32.cont [15/16] 0.0, 128
      %1172 = vxpose.xlu0.b32.end [16/16] 0.0, 128
      %v1173 = vpop.trf.xlu0
      %v1174 = vpop.trf.xlu0
      %v1175 = vpop.trf.xlu0
      %v1176 = vpop.trf.xlu0
      %v1177 = vpop.trf.xlu0
      %v1178 = vpop.trf.xlu0
      %v1179 = vpop.trf.xlu0
      %v1180 = vpop.trf.xlu0
      %v1181 = vpop.trf.xlu0
      %v1182 = vpop.trf.xlu0
      %v1183 = vpop.trf.xlu0
      %v1184 = vpop.trf.xlu0
      %v1185 = vpop.trf.xlu0
      %v1186 = vpop.trf.xlu0
      %v1187 = vpop.trf.xlu0
      %v1188 = vpop.trf.xlu0
      %s1189 = scalar_lea.vmem %s154, 20
      %1190 = vst.msk [vmem:[%s1189] sm:$0x7] %vm391, %v1173
      %v1191 = vsel %vm1080, 2147483647, %v1064
      %v1192 = vsel %vm430, %v1191, 2147483647
      %v1193 = vand.u32 %v1192, 65535
      %v1194 = vshra.s32 %v1192, 16
      %v1195 = vcvt.s32.f32 %v1193
      %v1196 = vcvt.s32.f32 %v1194
      %1197 = vmin.xlane.f32.xlu0 %v1196
      %v1198 = vpop.xlane.xlu0 %1197
      %vm1199 = vcmp.eq.f32.partialorder %v1196, %v1198
      %v1200 = vsel %vm1199, %v1195, inf
      %1201 = vmin.xlane.f32.xlu0 %v1200
      %v1202 = vpop.xlane.xlu0 %1201
      %v1203 = vcvt.f32.s32 %v1202
      %v1204 = vcvt.f32.s32 %v1198
      %v1205 = vshll.u32 %v1204, 16
      %v1206 = vadd.s32 %v1205, %v1203
      %vm1207 = vcmp.eq.s32.totalorder %v1191, %v1206
      %v1208 = vsel %vm1207, 1, 0
      %v1209 = vcvt.s32.f32 %v1208
      %v1211 = vsel %vm430, %v1209, 0
      %1213 = vmatprep.subr.mxu0 0.0
      %1214 = vmatpush1.msra.mxu0 %v155
      %1215 = vmatprep.subr.mxu0 0.0
      %1216 = vmatpush1.msra.mxu0 %v156
      %1217 = vmatprep.subr.mxu0 0.0
      %1218 = vmatpush1.msra.mxu0 %v157
      %1219 = vmatprep.subr.mxu0 0.0
      %1220 = vmatpush1.msra.mxu0 %v158
      %1221 = vmatprep.subr.mxu0 0.0
      %1222 = vmatpush1.msra.mxu0 %v159
      %1223 = vmatprep.subr.mxu0 0.0
      %1224 = vmatpush1.msra.mxu0 %v160
      %1225 = vmatprep.subr.mxu0 0.0
      %1226 = vmatpush1.msra.mxu0 %v161
      %1227 = vmatprep.subr.mxu0 0.0
      %1228 = vmatpush1.msra.mxu0 %v162
      %1229 = vmatprep.subr.mxu0 0.0
      %1230 = vmatpush1.msra.mxu0 0.0
      %1231 = vmatprep.subr.mxu0 0.0
      %1232 = vmatpush1.msra.mxu0 0.0
      %1233 = vmatprep.subr.mxu0 0.0
      %1234 = vmatpush1.msra.mxu0 0.0
      %1235 = vmatprep.subr.mxu0 0.0
      %1236 = vmatpush1.msra.mxu0 0.0
      %1237 = vmatprep.subr.mxu0 0.0
      %1238 = vmatpush1.msra.mxu0 0.0
      %1239 = vmatprep.subr.mxu0 0.0
      %1240 = vmatpush1.msra.mxu0 0.0
      %1241 = vmatprep.subr.mxu0 0.0
      %1242 = vmatpush1.msra.mxu0 0.0
      %1243 = vmatprep.subr.mxu0 0.0
      %1244 = vmatpush1.msra.mxu0 0.0
      %1245 = vmatprep.subr.mxu0 0.0
      %1246 = vmatpush1.msra.mxu0 0.0
      %1247 = vmatprep.subr.mxu0 0.0
      %1248 = vmatpush1.msra.mxu0 0.0
      %1249 = vmatprep.subr.mxu0 0.0
      %1250 = vmatpush1.msra.mxu0 0.0
      %1251 = vmatprep.subr.mxu0 0.0
      %1252 = vmatpush1.msra.mxu0 0.0
      %1253 = vmatprep.subr.mxu0 0.0
      %1254 = vmatpush1.msra.mxu0 0.0
      %1255 = vmatprep.subr.mxu0 0.0
      %1256 = vmatpush1.msra.mxu0 0.0
      %1257 = vmatprep.subr.mxu0 0.0
      %1258 = vmatpush1.msra.mxu0 0.0
      %1259 = vmatprep.subr.mxu0 0.0
      %1260 = vmatpush1.msra.mxu0 0.0
      %1261 = vmatprep.subr.mxu0 0.0
      %1262 = vmatpush1.msra.mxu0 0.0
      %1263 = vmatprep.subr.mxu0 0.0
      %1264 = vmatpush1.msra.mxu0 0.0
      %1265 = vmatprep.subr.mxu0 0.0
      %1266 = vmatpush1.msra.mxu0 0.0
      %1267 = vmatprep.subr.mxu0 0.0
      %1268 = vmatpush1.msra.mxu0 0.0
      %1269 = vmatprep.subr.mxu0 0.0
      %1270 = vmatpush1.msra.mxu0 0.0
      %1271 = vmatprep.subr.mxu0 0.0
      %1272 = vmatpush1.msra.mxu0 0.0
      %1273 = vmatprep.subr.mxu0 0.0
      %1274 = vmatpush1.msra.mxu0 0.0
      %1275 = vmatprep.subr.mxu0 0.0
      %1276 = vmatpush1.msra.mxu0 0.0
      %1277 = vmatprep.mubr.f32.mxu0 0.0
      %1278 = vmatmul.mubr.f32.gmra.mrb[0].mxu0 %v1211
      %v1279 = vpop.f32.mrb[0].mxu0
      %v1280 = vadd.f32 0.0, %v1279
      %v1281 = vpop.f32.mrb[0].mxu0
      %1282 = vdwg.mxu0
      %v1283 = vsub.f32 %v1280, %v210
      %1284 = vxpose.xlu0.b32.start [1/16] %v1283, 128
      %1285 = vxpose.xlu0.b32.cont [2/16] 0.0, 128
      %1286 = vxpose.xlu0.b32.cont [3/16] 0.0, 128
      %1287 = vxpose.xlu0.b32.cont [4/16] 0.0, 128
      %1288 = vxpose.xlu0.b32.cont [5/16] 0.0, 128
      %1289 = vxpose.xlu0.b32.cont [6/16] 0.0, 128
      %1290 = vxpose.xlu0.b32.cont [7/16] 0.0, 128
      %1291 = vxpose.xlu0.b32.cont [8/16] 0.0, 128
      %1292 = vxpose.xlu0.b32.cont [9/16] 0.0, 128
      %1293 = vxpose.xlu0.b32.cont [10/16] 0.0, 128
      %1294 = vxpose.xlu0.b32.cont [11/16] 0.0, 128
      %1295 = vxpose.xlu0.b32.cont [12/16] 0.0, 128
      %1296 = vxpose.xlu0.b32.cont [13/16] 0.0, 128
      %1297 = vxpose.xlu0.b32.cont [14/16] 0.0, 128
      %1298 = vxpose.xlu0.b32.cont [15/16] 0.0, 128
      %1299 = vxpose.xlu0.b32.end [16/16] 0.0, 128
      %v1300 = vpop.trf.xlu0
      %v1301 = vpop.trf.xlu0
      %v1302 = vpop.trf.xlu0
      %v1303 = vpop.trf.xlu0
      %v1304 = vpop.trf.xlu0
      %v1305 = vpop.trf.xlu0
      %v1306 = vpop.trf.xlu0
      %v1307 = vpop.trf.xlu0
      %v1308 = vpop.trf.xlu0
      %v1309 = vpop.trf.xlu0
      %v1310 = vpop.trf.xlu0
      %v1311 = vpop.trf.xlu0
      %v1312 = vpop.trf.xlu0
      %v1313 = vpop.trf.xlu0
      %v1314 = vpop.trf.xlu0
      %v1315 = vpop.trf.xlu0
      %s1316 = scalar_lea.vmem %s154, 24
      %1317 = vst.msk [vmem:[%s1316] sm:$0x7] %vm391, %v1300
      %v1318 = vsel %vm1207, 2147483647, %v1191
      %v1319 = vsel %vm430, %v1318, 2147483647
      %v1320 = vand.u32 %v1319, 65535
      %v1321 = vshra.s32 %v1319, 16
      %v1322 = vcvt.s32.f32 %v1320
      %v1323 = vcvt.s32.f32 %v1321
      %1324 = vmin.xlane.f32.xlu0 %v1323
      %v1325 = vpop.xlane.xlu0 %1324
      %vm1326 = vcmp.eq.f32.partialorder %v1323, %v1325
      %v1327 = vsel %vm1326, %v1322, inf
      %1328 = vmin.xlane.f32.xlu0 %v1327
      %v1329 = vpop.xlane.xlu0 %1328
      %v1330 = vcvt.f32.s32 %v1329
      %v1331 = vcvt.f32.s32 %v1325
      %v1332 = vshll.u32 %v1331, 16
      %v1333 = vadd.s32 %v1332, %v1330
      %vm1334 = vcmp.eq.s32.totalorder %v1318, %v1333
      %v1335 = vsel %vm1334, 1, 0
      %v1336 = vcvt.s32.f32 %v1335
      %v1338 = vsel %vm430, %v1336, 0
      %1340 = vmatprep.subr.mxu0 0.0
      %1341 = vmatpush1.msra.mxu0 %v155
      %1342 = vmatprep.subr.mxu0 0.0
      %1343 = vmatpush1.msra.mxu0 %v156
      %1344 = vmatprep.subr.mxu0 0.0
      %1345 = vmatpush1.msra.mxu0 %v157
      %1346 = vmatprep.subr.mxu0 0.0
      %1347 = vmatpush1.msra.mxu0 %v158
      %1348 = vmatprep.subr.mxu0 0.0
      %1349 = vmatpush1.msra.mxu0 %v159
      %1350 = vmatprep.subr.mxu0 0.0
      %1351 = vmatpush1.msra.mxu0 %v160
      %1352 = vmatprep.subr.mxu0 0.0
      %1353 = vmatpush1.msra.mxu0 %v161
      %1354 = vmatprep.subr.mxu0 0.0
      %1355 = vmatpush1.msra.mxu0 %v162
      %1356 = vmatprep.subr.mxu0 0.0
      %1357 = vmatpush1.msra.mxu0 0.0
      %1358 = vmatprep.subr.mxu0 0.0
      %1359 = vmatpush1.msra.mxu0 0.0
      %1360 = vmatprep.subr.mxu0 0.0
      %1361 = vmatpush1.msra.mxu0 0.0
      %1362 = vmatprep.subr.mxu0 0.0
      %1363 = vmatpush1.msra.mxu0 0.0
      %1364 = vmatprep.subr.mxu0 0.0
      %1365 = vmatpush1.msra.mxu0 0.0
      %1366 = vmatprep.subr.mxu0 0.0
      %1367 = vmatpush1.msra.mxu0 0.0
      %1368 = vmatprep.subr.mxu0 0.0
      %1369 = vmatpush1.msra.mxu0 0.0
      %1370 = vmatprep.subr.mxu0 0.0
      %1371 = vmatpush1.msra.mxu0 0.0
      %1372 = vmatprep.subr.mxu0 0.0
      %1373 = vmatpush1.msra.mxu0 0.0
      %1374 = vmatprep.subr.mxu0 0.0
      %1375 = vmatpush1.msra.mxu0 0.0
      %1376 = vmatprep.subr.mxu0 0.0
      %1377 = vmatpush1.msra.mxu0 0.0
      %1378 = vmatprep.subr.mxu0 0.0
      %1379 = vmatpush1.msra.mxu0 0.0
      %1380 = vmatprep.subr.mxu0 0.0
      %1381 = vmatpush1.msra.mxu0 0.0
      %1382 = vmatprep.subr.mxu0 0.0
      %1383 = vmatpush1.msra.mxu0 0.0
      %1384 = vmatprep.subr.mxu0 0.0
      %1385 = vmatpush1.msra.mxu0 0.0
      %1386 = vmatprep.subr.mxu0 0.0
      %1387 = vmatpush1.msra.mxu0 0.0
      %1388 = vmatprep.subr.mxu0 0.0
      %1389 = vmatpush1.msra.mxu0 0.0
      %1390 = vmatprep.subr.mxu0 0.0
      %1391 = vmatpush1.msra.mxu0 0.0
      %1392 = vmatprep.subr.mxu0 0.0
      %1393 = vmatpush1.msra.mxu0 0.0
      %1394 = vmatprep.subr.mxu0 0.0
      %1395 = vmatpush1.msra.mxu0 0.0
      %1396 = vmatprep.subr.mxu0 0.0
      %1397 = vmatpush1.msra.mxu0 0.0
      %1398 = vmatprep.subr.mxu0 0.0
      %1399 = vmatpush1.msra.mxu0 0.0
      %1400 = vmatprep.subr.mxu0 0.0
      %1401 = vmatpush1.msra.mxu0 0.0
      %1402 = vmatprep.subr.mxu0 0.0
      %1403 = vmatpush1.msra.mxu0 0.0
      %1404 = vmatprep.mubr.f32.mxu0 0.0
      %1405 = vmatmul.mubr.f32.gmra.mrb[0].mxu0 %v1338
      %v1406 = vpop.f32.mrb[0].mxu0
      %v1407 = vadd.f32 0.0, %v1406
      %v1408 = vpop.f32.mrb[0].mxu0
      %1409 = vdwg.mxu0
      %v1410 = vsub.f32 %v1407, %v210
      %1411 = vxpose.xlu0.b32.start [1/16] %v1410, 128
      %1412 = vxpose.xlu0.b32.cont [2/16] 0.0, 128
      %1413 = vxpose.xlu0.b32.cont [3/16] 0.0, 128
      %1414 = vxpose.xlu0.b32.cont [4/16] 0.0, 128
      %1415 = vxpose.xlu0.b32.cont [5/16] 0.0, 128
      %1416 = vxpose.xlu0.b32.cont [6/16] 0.0, 128
      %1417 = vxpose.xlu0.b32.cont [7/16] 0.0, 128
      %1418 = vxpose.xlu0.b32.cont [8/16] 0.0, 128
      %1419 = vxpose.xlu0.b32.cont [9/16] 0.0, 128
      %1420 = vxpose.xlu0.b32.cont [10/16] 0.0, 128
      %1421 = vxpose.xlu0.b32.cont [11/16] 0.0, 128
      %1422 = vxpose.xlu0.b32.cont [12/16] 0.0, 128
      %1423 = vxpose.xlu0.b32.cont [13/16] 0.0, 128
      %1424 = vxpose.xlu0.b32.cont [14/16] 0.0, 128
      %1425 = vxpose.xlu0.b32.cont [15/16] 0.0, 128
      %1426 = vxpose.xlu0.b32.end [16/16] 0.0, 128
      %v1427 = vpop.trf.xlu0
      %v1428 = vpop.trf.xlu0
      %v1429 = vpop.trf.xlu0
      %v1430 = vpop.trf.xlu0
      %v1431 = vpop.trf.xlu0
      %v1432 = vpop.trf.xlu0
      %v1433 = vpop.trf.xlu0
      %v1434 = vpop.trf.xlu0
      %v1435 = vpop.trf.xlu0
      %v1436 = vpop.trf.xlu0
      %v1437 = vpop.trf.xlu0
      %v1438 = vpop.trf.xlu0
      %v1439 = vpop.trf.xlu0
      %v1440 = vpop.trf.xlu0
      %v1441 = vpop.trf.xlu0
      %v1442 = vpop.trf.xlu0
      %s1443 = scalar_lea.vmem %s154, 28
      %1444 = vst.msk [vmem:[%s1443] sm:$0x7] %vm391, %v1427
      %p1445 = scmp.lt.s32.totalorder %s14, 1
      %s1446 = scalar_select %p1445, %s14, 1
      %s1447 = smul.addr %s1446, 4
      %s1448 = scalar_lea.vmem %s1, %s1447
      %p1449 = scmp.lt.s32.totalorder %s14, 1
      %s1450 = scalar_select %p1449, %s14, 1
      %s1451 = smul.addr %s1450, 8
      %s1452 = smul.addr %s1451, 4
      %s1453 = scalar_lea.vmem %s2, %s1452
      // Predicated region
      $region32: #{_lambda_.1} parent=23 // pred_check
        %p1454 = pneg %p58
      $region33: #{_lambda_.1} parent=23 // pred_check_branch
        %1456 = sbr.rel (%p1454) target = $region35
      $region34: #{_lambda_.1} parent=23 // pred_region
        _
      $region35: #{_lambda_.1} parent=23 // pred_fallthru
        _
      // Predicated region
      $region36: #{_lambda_.1} parent=23 // pred_check
        %p1457 = pneg %p84
      $region37: #{_lambda_.1} parent=23 // pred_check_branch
        %1459 = sbr.rel (%p1457) target = $region39
      $region38: #{_lambda_.1} parent=23 // pred_region
        _
      $region39: #{_lambda_.1} parent=23 // pred_fallthru
        _
    $region24: #{_lambda_.1} parent=5 // pred_fallthru
      _
    %p1460 = scmp.le.s32.totalorder 2, %s9
    // Predicated region
    $region40: #{_lambda_.1} parent=5 // pred_check
      %p1461 = pneg %p1460
    $region41: #{_lambda_.1} parent=5 // pred_check_branch
      %1463 = sbr.rel (%p1461) target = $region43
    $region42: #{_lambda_.1} parent=5 // pred_region
      %s1464 = ssub.s32 %s9, 2
      // Predicated region
      $region44: #{_lambda_.1} parent=42 // pred_check
        %p1465 = pneg %p64
      $region45: #{_lambda_.1} parent=42 // pred_check_branch
        %1467 = sbr.rel (%p1465) target = $region47
      $region46: #{_lambda_.1} parent=42 // pred_region
        %p1468 = scmp.lt.s32.totalorder %s15, 1
        %s1469 = scalar_select %p1468, %s15, 1
        %s1470 = smul.addr %s1469, 4
        %s1471 = scalar_lea.vmem %s1, %s1470
      $region47: #{_lambda_.1} parent=42 // pred_fallthru
        _
      // Predicated region
      $region48: #{_lambda_.1} parent=42 // pred_check
        %p1472 = pneg %p90
      $region49: #{_lambda_.1} parent=42 // pred_check_branch
        %1474 = sbr.rel (%p1472) target = $region51
      $region50: #{_lambda_.1} parent=42 // pred_region
        %p1475 = scmp.lt.s32.totalorder %s15, 1
        %s1476 = scalar_select %p1475, %s15, 1
        %s1477 = smul.addr %s1476, 8
        %s1478 = smul.addr %s1477, 4
        %s1479 = scalar_lea.vmem %s2, %s1478
      $region51: #{_lambda_.1} parent=42 // pred_fallthru
        _
    $region43: #{_lambda_.1} parent=5 // pred_fallthru
      _
  $region6: #{_lambda_.1} parent=0 // loop_footer
    %s13 = sadd.s32 1, %s9
  $region7: #{_lambda_.1} parent=0 // loop_footer_branch
    %8 = sbr.rel target = $region3
  $region8: #{_lambda_.1} parent=0 // loop_exit
    _

</llo_original>
